<compile_context>
chip_gen: v6e
topology: v6e:2x2x1
jax: 0.10.0
libtpu: 0.0.40
codegen_flags: <defaults>
</compile_context>

<pallas_src>
import functools

import jax
import jax.numpy as jnp
import numpy as np
from jax.experimental import pallas as pl
from jax.experimental.pallas import tpu as pltpu


def _res_block_kernel(x_ref, wv1_ref, b1_ref, wv2_ref, b2_ref, o_ref, pad_ref,
                      *, C: int):
    # x_ref   : (1, H, W*C)        lane-dense input (channel innermost in lanes)
    # wv*_ref : (3*(4C-1), W*C)    per-(ky, lane-shift) weight vectors
    # b*_ref  : (1, W*C)           bias tiled along lanes
    # o_ref   : (1, H, W*C)
    # pad_ref : (H+2, (W+4)*C)     staging slab: [guard C | pad C | W*C data | pad C | guard C]
    H = x_ref.shape[1]
    WC = x_ref.shape[2]
    LS = pad_ref.shape[1]
    NS = 4 * C - 1                       # distinct lane shifts s = kx*C + ci - co

    # ---- zero only border rows + guard/pad lanes (interior is overwritten below) ----
    pad_ref[0:1, :] = jnp.zeros((1, LS), jnp.float32)
    pad_ref[H + 1:H + 2, :] = jnp.zeros((1, LS), jnp.float32)
    pad_ref[1:H + 1, 0:2 * C] = jnp.zeros((H, 2 * C), jnp.float32)
    pad_ref[1:H + 1, LS - 2 * C:LS] = jnp.zeros((H, 2 * C), jnp.float32)

    def conv3x3(wv_ref):
        # out[y, x*C+co] = sum_{ky,s} pad[y+ky, C+s + (x*C+co)] * wv[ky,s][co]
        acc = jnp.zeros((H, WC), jnp.float32)
        for ky in range(3):
            for si in range(NS):
                start = si + 1                      # = C + (si - (C-1))
                win = pad_ref[ky:ky + H, start:start + WC]          # (H, W*C)
                wrow = wv_ref[ky * NS + si:ky * NS + si + 1, :]     # (1, W*C)
                acc = acc + win * wrow
        return acc

    # stage x into the padded slab interior, conv1 + bias + ReLU
    pad_ref[1:H + 1, 2 * C:2 * C + WC] = x_ref[0]
    h = jnp.maximum(conv3x3(wv1_ref) + b1_ref[...], 0.0)

    # stage h into the same slab (border still zero), conv2 + bias + residual
    pad_ref[1:H + 1, 2 * C:2 * C + WC] = h
    y = conv3x3(wv2_ref) + b2_ref[...] + x_ref[0]
    o_ref[0] = y.astype(o_ref.dtype)


def _shift_weight_vectors(w_k, C, W):
    """w_k: (3, 3, Cin, Cout)=[ky,kx,ci,co] -> (3*(4C-1), W*C) lane-shift weights.

    For lane shift s and output channel co, the unique (kx, ci) with
    kx*C + ci = s + co contributes weight w_k[ky, kx, ci, co]; otherwise 0.
    """
    NS = 4 * C - 1
    s_vals = np.arange(NS) - (C - 1)                  # (NS,)
    co = np.arange(C)                                 # (C,)
    t = s_vals[:, None] + co[None, :]                 # (NS, C) = kx*C + ci
    valid = (t >= 0) & (t < 3 * C)
    t_c = np.clip(t, 0, 3 * C - 1)
    kx_idx = t_c // C
    ci_idx = t_c % C
    co_idx = np.broadcast_to(co[None, :], t.shape)
    wv = w_k[:, kx_idx, ci_idx, co_idx]               # (3, NS, C)
    wv = jnp.where(jnp.asarray(valid)[None, :, :], wv, 0.0)
    wv = jnp.tile(wv, (1, 1, W))                      # (3, NS, W*C)
    return wv.reshape(3 * NS, W * C)


def residual_block(x_nchw, w1, b1, w2, b2):
    """x_nchw: (N, C, H, W); w: (Cout, Cin, 3, 3) PyTorch layout; b: (Cout,)."""
    N, C, H, W = x_nchw.shape
    Cout = w1.shape[0]
    assert Cout == C and w2.shape[0] == Cout, "residual add requires dim_in == dim_out"
    WC = W * C
    LS = (W + 4) * C
    NS = 4 * C - 1

    # lane-dense activation layout: (N, H, W*C), channels innermost in lanes
    x_l = jnp.transpose(x_nchw, (0, 2, 3, 1)).reshape(N, H, WC).astype(jnp.float32)

    w1_k = jnp.transpose(w1, (2, 3, 1, 0)).astype(jnp.float32)   # (3,3,Cin,Cout)
    w2_k = jnp.transpose(w2, (2, 3, 1, 0)).astype(jnp.float32)
    wv1 = _shift_weight_vectors(w1_k, C, W)
    wv2 = _shift_weight_vectors(w2_k, C, W)
    b1_l = jnp.tile(b1.astype(jnp.float32), W).reshape(1, WC)
    b2_l = jnp.tile(b2.astype(jnp.float32), W).reshape(1, WC)

    kernel = functools.partial(_res_block_kernel, C=C)

    out = pl.pallas_call(
        kernel,
        out_shape=jax.ShapeDtypeStruct((N, H, WC), jnp.float32),
        grid_spec=pltpu.PrefetchScalarGridSpec(
            num_scalar_prefetch=0,
            grid=(N,),
            in_specs=[
                pl.BlockSpec((1, H, WC), lambda n: (n, 0, 0)),
                pl.BlockSpec((3 * NS, WC), lambda n: (0, 0)),
                pl.BlockSpec((1, WC), lambda n: (0, 0)),
                pl.BlockSpec((3 * NS, WC), lambda n: (0, 0)),
                pl.BlockSpec((1, WC), lambda n: (0, 0)),
            ],
            out_specs=pl.BlockSpec((1, H, WC), lambda n: (n, 0, 0)),
            scratch_shapes=[pltpu.VMEM((H + 2, LS), jnp.float32)],
        ),
        compiler_params=pltpu.CompilerParams(
            dimension_semantics=("parallel",)),
    )(x_l, wv1, b1_l, wv2, b2_l)

    out = out.reshape(N, H, W, C)
    return jnp.transpose(out, (0, 3, 1, 2))                      # back to NCHW


def _reference(x, w1, b1, w2, b2):
    dn = ("NCHW", "OIHW", "NCHW")
    h = jax.lax.conv_general_dilated(x, w1, (1, 1), ((1, 1), (1, 1)),
                                     dimension_numbers=dn)
    h = jax.nn.relu(h + b1.reshape(1, -1, 1, 1))
    h2 = jax.lax.conv_general_dilated(h, w2, (1, 1), ((1, 1), (1, 1)),
                                      dimension_numbers=dn)
    h2 = h2 + b2.reshape(1, -1, 1, 1)
    return x + h2


if __name__ == "__main__":
    key = jax.random.PRNGKey(0)
    k_x, k_w1, k_b1, k_w2, k_b2 = jax.random.split(key, 5)

    N, C, H, W = 2, 4, 16, 16            # dim_in == dim_out == 4
    x = jax.random.normal(k_x, (N, C, H, W), jnp.float32)
    w1 = jax.random.normal(k_w1, (C, C, 3, 3), jnp.float32) * 0.1
    b1 = jax.random.normal(k_b1, (C,), jnp.float32) * 0.1
    w2 = jax.random.normal(k_w2, (C, C, 3, 3), jnp.float32) * 0.1
    b2 = jax.random.normal(k_b2, (C,), jnp.float32) * 0.1

    out = jax.block_until_ready(residual_block(x, w1, b1, w2, b2))
    ref = jax.block_until_ready(_reference(x, w1, b1, w2, b2))

    assert out.shape == (N, C, H, W)
    np.testing.assert_allclose(np.asarray(out), np.asarray(ref),
                               rtol=1e-4, atol=1e-3)
    print("KERNEL_OK")
</pallas_src>

<mosaic_0001>
module attributes {stable_mosaic.version = 11 : i64} {
  func.func @_res_block_kernel(%arg0: i32, %arg1: memref<1x16x64xf32, #tpu.memory_space<vmem>>, %arg2: memref<45x64xf32, #tpu.memory_space<vmem>>, %arg3: memref<1x64xf32, #tpu.memory_space<vmem>>, %arg4: memref<45x64xf32, #tpu.memory_space<vmem>>, %arg5: memref<1x64xf32, #tpu.memory_space<vmem>>, %arg6: memref<1x16x64xf32, #tpu.memory_space<vmem>>, %arg7: memref<18x80xf32, #tpu.memory_space<vmem>>) attributes {dimension_semantics = [#tpu.dimension_semantics<parallel>], iteration_bounds = array<i64: 2>, scalar_prefetch = 0 : i64, scratch_operands = 1 : i64, tpu.core_type = #tpu.core_type<tc>, window_params = [{transform_indices = @transform_0, window_bounds = array<i64: 1, 16, 64>}, {pipeline_mode = #tpu.pipeline_mode<synchronous>, transform_indices = @transform_1, window_bounds = array<i64: 45, 64>}, {pipeline_mode = #tpu.pipeline_mode<synchronous>, transform_indices = @transform_2, window_bounds = array<i64: 1, 64>}, {pipeline_mode = #tpu.pipeline_mode<synchronous>, transform_indices = @transform_3, window_bounds = array<i64: 45, 64>}, {pipeline_mode = #tpu.pipeline_mode<synchronous>, transform_indices = @transform_4, window_bounds = array<i64: 1, 64>}, {transform_indices = @transform_5, window_bounds = array<i64: 1, 16, 64>}]} {
    %cst = arith.constant 0.000000e+00 : f32
    %0 = vector.broadcast %cst : f32 to vector<1x80xf32>
    %c0 = arith.constant 0 : index
    %c0_0 = arith.constant 0 : index
    %1 = vector.load %arg7[%c0, %c0_0] : memref<18x80xf32, #tpu.memory_space<vmem>>, vector<1x80xf32>
    tpu.vector_store %arg7[%c0, %c0_0], %0 {strides = array<i32>} : memref<18x80xf32, #tpu.memory_space<vmem>>, vector<1x80xf32>,
    %cst_1 = arith.constant 0.000000e+00 : f32
    %2 = vector.broadcast %cst_1 : f32 to vector<1x80xf32>
    %c17 = arith.constant 17 : index
    %c0_2 = arith.constant 0 : index
    %3 = vector.load %arg7[%c17, %c0_2] : memref<18x80xf32, #tpu.memory_space<vmem>>, vector<1x80xf32>
    tpu.vector_store %arg7[%c17, %c0_2], %2 {strides = array<i32>} : memref<18x80xf32, #tpu.memory_space<vmem>>, vector<1x80xf32>,
    %cst_3 = arith.constant 0.000000e+00 : f32
    %4 = vector.broadcast %cst_3 : f32 to vector<16x8xf32>
    %c1 = arith.constant 1 : index
    %c0_4 = arith.constant 0 : index
    %5 = vector.load %arg7[%c1, %c0_4] : memref<18x80xf32, #tpu.memory_space<vmem>>, vector<16x8xf32>
    tpu.vector_store %arg7[%c1, %c0_4], %4 {strides = array<i32>} : memref<18x80xf32, #tpu.memory_space<vmem>>, vector<16x8xf32>,
    %cst_5 = arith.constant 0.000000e+00 : f32
    %6 = vector.broadcast %cst_5 : f32 to vector<16x8xf32>
    %c1_6 = arith.constant 1 : index
    %c72 = arith.constant 72 : index
    %7 = vector.load %arg7[%c1_6, %c72] : memref<18x80xf32, #tpu.memory_space<vmem>>, vector<16x8xf32>
    tpu.vector_store %arg7[%c1_6, %c72], %6 {strides = array<i32>} : memref<18x80xf32, #tpu.memory_space<vmem>>, vector<16x8xf32>,
    %c0_7 = arith.constant 0 : index
    %c0_8 = arith.constant 0 : index
    %c0_9 = arith.constant 0 : index
    %8 = vector.load %arg1[%c0_7, %c0_8, %c0_9] : memref<1x16x64xf32, #tpu.memory_space<vmem>>, vector<1x16x64xf32>
    %9 = vector.shape_cast %8 : vector<1x16x64xf32> to vector<16x64xf32>
    %c1_10 = arith.constant 1 : index
    %c8 = arith.constant 8 : index
    %10 = vector.load %arg7[%c1_10, %c8] : memref<18x80xf32, #tpu.memory_space<vmem>>, vector<16x64xf32>
    tpu.vector_store %arg7[%c1_10, %c8], %9 {strides = array<i32>} : memref<18x80xf32, #tpu.memory_space<vmem>>, vector<16x64xf32>,
    %cst_11 = arith.constant 0.000000e+00 : f32
    %11 = vector.broadcast %cst_11 : f32 to vector<16x64xf32>
    %c0_12 = arith.constant 0 : index
    %c1_13 = arith.constant 1 : index
    %12 = vector.load %arg7[%c0_12, %c1_13] : memref<18x80xf32, #tpu.memory_space<vmem>>, vector<16x64xf32>
    %c0_14 = arith.constant 0 : index
    %c0_15 = arith.constant 0 : index
    %13 = vector.load %arg2[%c0_14, %c0_15] : memref<45x64xf32, #tpu.memory_space<vmem>>, vector<1x64xf32>
    %14 = vector.broadcast %13 : vector<1x64xf32> to vector<16x64xf32>
    %15 = arith.mulf %12, %14 : vector<16x64xf32>
    %16 = arith.addf %11, %15 : vector<16x64xf32>
    %c0_16 = arith.constant 0 : index
    %c2 = arith.constant 2 : index
    %17 = vector.load %arg7[%c0_16, %c2] : memref<18x80xf32, #tpu.memory_space<vmem>>, vector<16x64xf32>
    %c1_17 = arith.constant 1 : index
    %c0_18 = arith.constant 0 : index
    %18 = vector.load %arg2[%c1_17, %c0_18] : memref<45x64xf32, #tpu.memory_space<vmem>>, vector<1x64xf32>
    %19 = vector.broadcast %18 : vector<1x64xf32> to vector<16x64xf32>
    %20 = arith.mulf %17, %19 : vector<16x64xf32>
    %21 = arith.addf %16, %20 : vector<16x64xf32>
    %c0_19 = arith.constant 0 : index
    %c3 = arith.constant 3 : index
    %22 = vector.load %arg7[%c0_19, %c3] : memref<18x80xf32, #tpu.memory_space<vmem>>, vector<16x64xf32>
    %c2_20 = arith.constant 2 : index
    %c0_21 = arith.constant 0 : index
    %23 = vector.load %arg2[%c2_20, %c0_21] : memref<45x64xf32, #tpu.memory_space<vmem>>, vector<1x64xf32>
    %24 = vector.broadcast %23 : vector<1x64xf32> to vector<16x64xf32>
    %25 = arith.mulf %22, %24 : vector<16x64xf32>
    %26 = arith.addf %21, %25 : vector<16x64xf32>
    %c0_22 = arith.constant 0 : index
    %c4 = arith.constant 4 : index
    %27 = vector.load %arg7[%c0_22, %c4] : memref<18x80xf32, #tpu.memory_space<vmem>>, vector<16x64xf32>
    %c3_23 = arith.constant 3 : index
    %c0_24 = arith.constant 0 : index
    %28 = vector.load %arg2[%c3_23, %c0_24] : memref<45x64xf32, #tpu.memory_space<vmem>>, vector<1x64xf32>
    %29 = vector.broadcast %28 : vector<1x64xf32> to vector<16x64xf32>
    %30 = arith.mulf %27, %29 : vector<16x64xf32>
    %31 = arith.addf %26, %30 : vector<16x64xf32>
    %c0_25 = arith.constant 0 : index
    %c5 = arith.constant 5 : index
    %32 = vector.load %arg7[%c0_25, %c5] : memref<18x80xf32, #tpu.memory_space<vmem>>, vector<16x64xf32>
    %c4_26 = arith.constant 4 : index
    %c0_27 = arith.constant 0 : index
    %33 = vector.load %arg2[%c4_26, %c0_27] : memref<45x64xf32, #tpu.memory_space<vmem>>, vector<1x64xf32>
    %34 = vector.broadcast %33 : vector<1x64xf32> to vector<16x64xf32>
    %35 = arith.mulf %32, %34 : vector<16x64xf32>
    %36 = arith.addf %31, %35 : vector<16x64xf32>
    %c0_28 = arith.constant 0 : index
    %c6 = arith.constant 6 : index
    %37 = vector.load %arg7[%c0_28, %c6] : memref<18x80xf32, #tpu.memory_space<vmem>>, vector<16x64xf32>
    %c5_29 = arith.constant 5 : index
    %c0_30 = arith.constant 0 : index
    %38 = vector.load %arg2[%c5_29, %c0_30] : memref<45x64xf32, #tpu.memory_space<vmem>>, vector<1x64xf32>
    %39 = vector.broadcast %38 : vector<1x64xf32> to vector<16x64xf32>
    %40 = arith.mulf %37, %39 : vector<16x64xf32>
    %41 = arith.addf %36, %40 : vector<16x64xf32>
    %c0_31 = arith.constant 0 : index
    %c7 = arith.constant 7 : index
    %42 = vector.load %arg7[%c0_31, %c7] : memref<18x80xf32, #tpu.memory_space<vmem>>, vector<16x64xf32>
    %c6_32 = arith.constant 6 : index
    %c0_33 = arith.constant 0 : index
    %43 = vector.load %arg2[%c6_32, %c0_33] : memref<45x64xf32, #tpu.memory_space<vmem>>, vector<1x64xf32>
    %44 = vector.broadcast %43 : vector<1x64xf32> to vector<16x64xf32>
    %45 = arith.mulf %42, %44 : vector<16x64xf32>
    %46 = arith.addf %41, %45 : vector<16x64xf32>
    %c0_34 = arith.constant 0 : index
    %c8_35 = arith.constant 8 : index
    %47 = vector.load %arg7[%c0_34, %c8_35] : memref<18x80xf32, #tpu.memory_space<vmem>>, vector<16x64xf32>
    %c7_36 = arith.constant 7 : index
    %c0_37 = arith.constant 0 : index
    %48 = vector.load %arg2[%c7_36, %c0_37] : memref<45x64xf32, #tpu.memory_space<vmem>>, vector<1x64xf32>
    %49 = vector.broadcast %48 : vector<1x64xf32> to vector<16x64xf32>
    %50 = arith.mulf %47, %49 : vector<16x64xf32>
    %51 = arith.addf %46, %50 : vector<16x64xf32>
    %c0_38 = arith.constant 0 : index
    %c9 = arith.constant 9 : index
    %52 = vector.load %arg7[%c0_38, %c9] : memref<18x80xf32, #tpu.memory_space<vmem>>, vector<16x64xf32>
    %c8_39 = arith.constant 8 : index
    %c0_40 = arith.constant 0 : index
    %53 = vector.load %arg2[%c8_39, %c0_40] : memref<45x64xf32, #tpu.memory_space<vmem>>, vector<1x64xf32>
    %54 = vector.broadcast %53 : vector<1x64xf32> to vector<16x64xf32>
    %55 = arith.mulf %52, %54 : vector<16x64xf32>
    %56 = arith.addf %51, %55 : vector<16x64xf32>
    %c0_41 = arith.constant 0 : index
    %c10 = arith.constant 10 : index
    %57 = vector.load %arg7[%c0_41, %c10] : memref<18x80xf32, #tpu.memory_space<vmem>>, vector<16x64xf32>
    %c9_42 = arith.constant 9 : index
    %c0_43 = arith.constant 0 : index
    %58 = vector.load %arg2[%c9_42, %c0_43] : memref<45x64xf32, #tpu.memory_space<vmem>>, vector<1x64xf32>
    %59 = vector.broadcast %58 : vector<1x64xf32> to vector<16x64xf32>
    %60 = arith.mulf %57, %59 : vector<16x64xf32>
    %61 = arith.addf %56, %60 : vector<16x64xf32>
    %c0_44 = arith.constant 0 : index
    %c11 = arith.constant 11 : index
    %62 = vector.load %arg7[%c0_44, %c11] : memref<18x80xf32, #tpu.memory_space<vmem>>, vector<16x64xf32>
    %c10_45 = arith.constant 10 : index
    %c0_46 = arith.constant 0 : index
    %63 = vector.load %arg2[%c10_45, %c0_46] : memref<45x64xf32, #tpu.memory_space<vmem>>, vector<1x64xf32>
    %64 = vector.broadcast %63 : vector<1x64xf32> to vector<16x64xf32>
    %65 = arith.mulf %62, %64 : vector<16x64xf32>
    %66 = arith.addf %61, %65 : vector<16x64xf32>
    %c0_47 = arith.constant 0 : index
    %c12 = arith.constant 12 : index
    %67 = vector.load %arg7[%c0_47, %c12] : memref<18x80xf32, #tpu.memory_space<vmem>>, vector<16x64xf32>
    %c11_48 = arith.constant 11 : index
    %c0_49 = arith.constant 0 : index
    %68 = vector.load %arg2[%c11_48, %c0_49] : memref<45x64xf32, #tpu.memory_space<vmem>>, vector<1x64xf32>
    %69 = vector.broadcast %68 : vector<1x64xf32> to vector<16x64xf32>
    %70 = arith.mulf %67, %69 : vector<16x64xf32>
    %71 = arith.addf %66, %70 : vector<16x64xf32>
    %c0_50 = arith.constant 0 : index
    %c13 = arith.constant 13 : index
    %72 = vector.load %arg7[%c0_50, %c13] : memref<18x80xf32, #tpu.memory_space<vmem>>, vector<16x64xf32>
    %c12_51 = arith.constant 12 : index
    %c0_52 = arith.constant 0 : index
    %73 = vector.load %arg2[%c12_51, %c0_52] : memref<45x64xf32, #tpu.memory_space<vmem>>, vector<1x64xf32>
    %74 = vector.broadcast %73 : vector<1x64xf32> to vector<16x64xf32>
    %75 = arith.mulf %72, %74 : vector<16x64xf32>
    %76 = arith.addf %71, %75 : vector<16x64xf32>
    %c0_53 = arith.constant 0 : index
    %c14 = arith.constant 14 : index
    %77 = vector.load %arg7[%c0_53, %c14] : memref<18x80xf32, #tpu.memory_space<vmem>>, vector<16x64xf32>
    %c13_54 = arith.constant 13 : index
    %c0_55 = arith.constant 0 : index
    %78 = vector.load %arg2[%c13_54, %c0_55] : memref<45x64xf32, #tpu.memory_space<vmem>>, vector<1x64xf32>
    %79 = vector.broadcast %78 : vector<1x64xf32> to vector<16x64xf32>
    %80 = arith.mulf %77, %79 : vector<16x64xf32>
    %81 = arith.addf %76, %80 : vector<16x64xf32>
    %c0_56 = arith.constant 0 : index
    %c15 = arith.constant 15 : index
    %82 = vector.load %arg7[%c0_56, %c15] : memref<18x80xf32, #tpu.memory_space<vmem>>, vector<16x64xf32>
    %c14_57 = arith.constant 14 : index
    %c0_58 = arith.constant 0 : index
    %83 = vector.load %arg2[%c14_57, %c0_58] : memref<45x64xf32, #tpu.memory_space<vmem>>, vector<1x64xf32>
    %84 = vector.broadcast %83 : vector<1x64xf32> to vector<16x64xf32>
    %85 = arith.mulf %82, %84 : vector<16x64xf32>
    %86 = arith.addf %81, %85 : vector<16x64xf32>
    %c1_59 = arith.constant 1 : index
    %c1_60 = arith.constant 1 : index
    %87 = vector.load %arg7[%c1_59, %c1_60] : memref<18x80xf32, #tpu.memory_space<vmem>>, vector<16x64xf32>
    %c15_61 = arith.constant 15 : index
    %c0_62 = arith.constant 0 : index
    %88 = vector.load %arg2[%c15_61, %c0_62] : memref<45x64xf32, #tpu.memory_space<vmem>>, vector<1x64xf32>
    %89 = vector.broadcast %88 : vector<1x64xf32> to vector<16x64xf32>
    %90 = arith.mulf %87, %89 : vector<16x64xf32>
    %91 = arith.addf %86, %90 : vector<16x64xf32>
    %c1_63 = arith.constant 1 : index
    %c2_64 = arith.constant 2 : index
    %92 = vector.load %arg7[%c1_63, %c2_64] : memref<18x80xf32, #tpu.memory_space<vmem>>, vector<16x64xf32>
    %c16 = arith.constant 16 : index
    %c0_65 = arith.constant 0 : index
    %93 = vector.load %arg2[%c16, %c0_65] : memref<45x64xf32, #tpu.memory_space<vmem>>, vector<1x64xf32>
    %94 = vector.broadcast %93 : vector<1x64xf32> to vector<16x64xf32>
    %95 = arith.mulf %92, %94 : vector<16x64xf32>
    %96 = arith.addf %91, %95 : vector<16x64xf32>
    %c1_66 = arith.constant 1 : index
    %c3_67 = arith.constant 3 : index
    %97 = vector.load %arg7[%c1_66, %c3_67] : memref<18x80xf32, #tpu.memory_space<vmem>>, vector<16x64xf32>
    %c17_68 = arith.constant 17 : index
    %c0_69 = arith.constant 0 : index
    %98 = vector.load %arg2[%c17_68, %c0_69] : memref<45x64xf32, #tpu.memory_space<vmem>>, vector<1x64xf32>
    %99 = vector.broadcast %98 : vector<1x64xf32> to vector<16x64xf32>
    %100 = arith.mulf %97, %99 : vector<16x64xf32>
    %101 = arith.addf %96, %100 : vector<16x64xf32>
    %c1_70 = arith.constant 1 : index
    %c4_71 = arith.constant 4 : index
    %102 = vector.load %arg7[%c1_70, %c4_71] : memref<18x80xf32, #tpu.memory_space<vmem>>, vector<16x64xf32>
    %c18 = arith.constant 18 : index
    %c0_72 = arith.constant 0 : index
    %103 = vector.load %arg2[%c18, %c0_72] : memref<45x64xf32, #tpu.memory_space<vmem>>, vector<1x64xf32>
    %104 = vector.broadcast %103 : vector<1x64xf32> to vector<16x64xf32>
    %105 = arith.mulf %102, %104 : vector<16x64xf32>
    %106 = arith.addf %101, %105 : vector<16x64xf32>
    %c1_73 = arith.constant 1 : index
    %c5_74 = arith.constant 5 : index
    %107 = vector.load %arg7[%c1_73, %c5_74] : memref<18x80xf32, #tpu.memory_space<vmem>>, vector<16x64xf32>
    %c19 = arith.constant 19 : index
    %c0_75 = arith.constant 0 : index
    %108 = vector.load %arg2[%c19, %c0_75] : memref<45x64xf32, #tpu.memory_space<vmem>>, vector<1x64xf32>
    %109 = vector.broadcast %108 : vector<1x64xf32> to vector<16x64xf32>
    %110 = arith.mulf %107, %109 : vector<16x64xf32>
    %111 = arith.addf %106, %110 : vector<16x64xf32>
    %c1_76 = arith.constant 1 : index
    %c6_77 = arith.constant 6 : index
    %112 = vector.load %arg7[%c1_76, %c6_77] : memref<18x80xf32, #tpu.memory_space<vmem>>, vector<16x64xf32>
    %c20 = arith.constant 20 : index
    %c0_78 = arith.constant 0 : index
    %113 = vector.load %arg2[%c20, %c0_78] : memref<45x64xf32, #tpu.memory_space<vmem>>, vector<1x64xf32>
    %114 = vector.broadcast %113 : vector<1x64xf32> to vector<16x64xf32>
    %115 = arith.mulf %112, %114 : vector<16x64xf32>
    %116 = arith.addf %111, %115 : vector<16x64xf32>
    %c1_79 = arith.constant 1 : index
    %c7_80 = arith.constant 7 : index
    %117 = vector.load %arg7[%c1_79, %c7_80] : memref<18x80xf32, #tpu.memory_space<vmem>>, vector<16x64xf32>
    %c21 = arith.constant 21 : index
    %c0_81 = arith.constant 0 : index
    %118 = vector.load %arg2[%c21, %c0_81] : memref<45x64xf32, #tpu.memory_space<vmem>>, vector<1x64xf32>
    %119 = vector.broadcast %118 : vector<1x64xf32> to vector<16x64xf32>
    %120 = arith.mulf %117, %119 : vector<16x64xf32>
    %121 = arith.addf %116, %120 : vector<16x64xf32>
    %c1_82 = arith.constant 1 : index
    %c8_83 = arith.constant 8 : index
    %122 = vector.load %arg7[%c1_82, %c8_83] : memref<18x80xf32, #tpu.memory_space<vmem>>, vector<16x64xf32>
    %c22 = arith.constant 22 : index
    %c0_84 = arith.constant 0 : index
    %123 = vector.load %arg2[%c22, %c0_84] : memref<45x64xf32, #tpu.memory_space<vmem>>, vector<1x64xf32>
    %124 = vector.broadcast %123 : vector<1x64xf32> to vector<16x64xf32>
    %125 = arith.mulf %122, %124 : vector<16x64xf32>
    %126 = arith.addf %121, %125 : vector<16x64xf32>
    %c1_85 = arith.constant 1 : index
    %c9_86 = arith.constant 9 : index
    %127 = vector.load %arg7[%c1_85, %c9_86] : memref<18x80xf32, #tpu.memory_space<vmem>>, vector<16x64xf32>
    %c23 = arith.constant 23 : index
    %c0_87 = arith.constant 0 : index
    %128 = vector.load %arg2[%c23, %c0_87] : memref<45x64xf32, #tpu.memory_space<vmem>>, vector<1x64xf32>
    %129 = vector.broadcast %128 : vector<1x64xf32> to vector<16x64xf32>
    %130 = arith.mulf %127, %129 : vector<16x64xf32>
    %131 = arith.addf %126, %130 : vector<16x64xf32>
    %c1_88 = arith.constant 1 : index
    %c10_89 = arith.constant 10 : index
    %132 = vector.load %arg7[%c1_88, %c10_89] : memref<18x80xf32, #tpu.memory_space<vmem>>, vector<16x64xf32>
    %c24 = arith.constant 24 : index
    %c0_90 = arith.constant 0 : index
    %133 = vector.load %arg2[%c24, %c0_90] : memref<45x64xf32, #tpu.memory_space<vmem>>, vector<1x64xf32>
    %134 = vector.broadcast %133 : vector<1x64xf32> to vector<16x64xf32>
    %135 = arith.mulf %132, %134 : vector<16x64xf32>
    %136 = arith.addf %131, %135 : vector<16x64xf32>
    %c1_91 = arith.constant 1 : index
    %c11_92 = arith.constant 11 : index
    %137 = vector.load %arg7[%c1_91, %c11_92] : memref<18x80xf32, #tpu.memory_space<vmem>>, vector<16x64xf32>
    %c25 = arith.constant 25 : index
    %c0_93 = arith.constant 0 : index
    %138 = vector.load %arg2[%c25, %c0_93] : memref<45x64xf32, #tpu.memory_space<vmem>>, vector<1x64xf32>
    %139 = vector.broadcast %138 : vector<1x64xf32> to vector<16x64xf32>
    %140 = arith.mulf %137, %139 : vector<16x64xf32>
    %141 = arith.addf %136, %140 : vector<16x64xf32>
    %c1_94 = arith.constant 1 : index
    %c12_95 = arith.constant 12 : index
    %142 = vector.load %arg7[%c1_94, %c12_95] : memref<18x80xf32, #tpu.memory_space<vmem>>, vector<16x64xf32>
    %c26 = arith.constant 26 : index
    %c0_96 = arith.constant 0 : index
    %143 = vector.load %arg2[%c26, %c0_96] : memref<45x64xf32, #tpu.memory_space<vmem>>, vector<1x64xf32>
    %144 = vector.broadcast %143 : vector<1x64xf32> to vector<16x64xf32>
    %145 = arith.mulf %142, %144 : vector<16x64xf32>
    %146 = arith.addf %141, %145 : vector<16x64xf32>
    %c1_97 = arith.constant 1 : index
    %c13_98 = arith.constant 13 : index
    %147 = vector.load %arg7[%c1_97, %c13_98] : memref<18x80xf32, #tpu.memory_space<vmem>>, vector<16x64xf32>
    %c27 = arith.constant 27 : index
    %c0_99 = arith.constant 0 : index
    %148 = vector.load %arg2[%c27, %c0_99] : memref<45x64xf32, #tpu.memory_space<vmem>>, vector<1x64xf32>
    %149 = vector.broadcast %148 : vector<1x64xf32> to vector<16x64xf32>
    %150 = arith.mulf %147, %149 : vector<16x64xf32>
    %151 = arith.addf %146, %150 : vector<16x64xf32>
    %c1_100 = arith.constant 1 : index
    %c14_101 = arith.constant 14 : index
    %152 = vector.load %arg7[%c1_100, %c14_101] : memref<18x80xf32, #tpu.memory_space<vmem>>, vector<16x64xf32>
    %c28 = arith.constant 28 : index
    %c0_102 = arith.constant 0 : index
    %153 = vector.load %arg2[%c28, %c0_102] : memref<45x64xf32, #tpu.memory_space<vmem>>, vector<1x64xf32>
    %154 = vector.broadcast %153 : vector<1x64xf32> to vector<16x64xf32>
    %155 = arith.mulf %152, %154 : vector<16x64xf32>
    %156 = arith.addf %151, %155 : vector<16x64xf32>
    %c1_103 = arith.constant 1 : index
    %c15_104 = arith.constant 15 : index
    %157 = vector.load %arg7[%c1_103, %c15_104] : memref<18x80xf32, #tpu.memory_space<vmem>>, vector<16x64xf32>
    %c29 = arith.constant 29 : index
    %c0_105 = arith.constant 0 : index
    %158 = vector.load %arg2[%c29, %c0_105] : memref<45x64xf32, #tpu.memory_space<vmem>>, vector<1x64xf32>
    %159 = vector.broadcast %158 : vector<1x64xf32> to vector<16x64xf32>
    %160 = arith.mulf %157, %159 : vector<16x64xf32>
    %161 = arith.addf %156, %160 : vector<16x64xf32>
    %c2_106 = arith.constant 2 : index
    %c1_107 = arith.constant 1 : index
    %162 = vector.load %arg7[%c2_106, %c1_107] : memref<18x80xf32, #tpu.memory_space<vmem>>, vector<16x64xf32>
    %c30 = arith.constant 30 : index
    %c0_108 = arith.constant 0 : index
    %163 = vector.load %arg2[%c30, %c0_108] : memref<45x64xf32, #tpu.memory_space<vmem>>, vector<1x64xf32>
    %164 = vector.broadcast %163 : vector<1x64xf32> to vector<16x64xf32>
    %165 = arith.mulf %162, %164 : vector<16x64xf32>
    %166 = arith.addf %161, %165 : vector<16x64xf32>
    %c2_109 = arith.constant 2 : index
    %c2_110 = arith.constant 2 : index
    %167 = vector.load %arg7[%c2_109, %c2_110] : memref<18x80xf32, #tpu.memory_space<vmem>>, vector<16x64xf32>
    %c31 = arith.constant 31 : index
    %c0_111 = arith.constant 0 : index
    %168 = vector.load %arg2[%c31, %c0_111] : memref<45x64xf32, #tpu.memory_space<vmem>>, vector<1x64xf32>
    %169 = vector.broadcast %168 : vector<1x64xf32> to vector<16x64xf32>
    %170 = arith.mulf %167, %169 : vector<16x64xf32>
    %171 = arith.addf %166, %170 : vector<16x64xf32>
    %c2_112 = arith.constant 2 : index
    %c3_113 = arith.constant 3 : index
    %172 = vector.load %arg7[%c2_112, %c3_113] : memref<18x80xf32, #tpu.memory_space<vmem>>, vector<16x64xf32>
    %c32 = arith.constant 32 : index
    %c0_114 = arith.constant 0 : index
    %173 = vector.load %arg2[%c32, %c0_114] : memref<45x64xf32, #tpu.memory_space<vmem>>, vector<1x64xf32>
    %174 = vector.broadcast %173 : vector<1x64xf32> to vector<16x64xf32>
    %175 = arith.mulf %172, %174 : vector<16x64xf32>
    %176 = arith.addf %171, %175 : vector<16x64xf32>
    %c2_115 = arith.constant 2 : index
    %c4_116 = arith.constant 4 : index
    %177 = vector.load %arg7[%c2_115, %c4_116] : memref<18x80xf32, #tpu.memory_space<vmem>>, vector<16x64xf32>
    %c33 = arith.constant 33 : index
    %c0_117 = arith.constant 0 : index
    %178 = vector.load %arg2[%c33, %c0_117] : memref<45x64xf32, #tpu.memory_space<vmem>>, vector<1x64xf32>
    %179 = vector.broadcast %178 : vector<1x64xf32> to vector<16x64xf32>
    %180 = arith.mulf %177, %179 : vector<16x64xf32>
    %181 = arith.addf %176, %180 : vector<16x64xf32>
    %c2_118 = arith.constant 2 : index
    %c5_119 = arith.constant 5 : index
    %182 = vector.load %arg7[%c2_118, %c5_119] : memref<18x80xf32, #tpu.memory_space<vmem>>, vector<16x64xf32>
    %c34 = arith.constant 34 : index
    %c0_120 = arith.constant 0 : index
    %183 = vector.load %arg2[%c34, %c0_120] : memref<45x64xf32, #tpu.memory_space<vmem>>, vector<1x64xf32>
    %184 = vector.broadcast %183 : vector<1x64xf32> to vector<16x64xf32>
    %185 = arith.mulf %182, %184 : vector<16x64xf32>
    %186 = arith.addf %181, %185 : vector<16x64xf32>
    %c2_121 = arith.constant 2 : index
    %c6_122 = arith.constant 6 : index
    %187 = vector.load %arg7[%c2_121, %c6_122] : memref<18x80xf32, #tpu.memory_space<vmem>>, vector<16x64xf32>
    %c35 = arith.constant 35 : index
    %c0_123 = arith.constant 0 : index
    %188 = vector.load %arg2[%c35, %c0_123] : memref<45x64xf32, #tpu.memory_space<vmem>>, vector<1x64xf32>
    %189 = vector.broadcast %188 : vector<1x64xf32> to vector<16x64xf32>
    %190 = arith.mulf %187, %189 : vector<16x64xf32>
    %191 = arith.addf %186, %190 : vector<16x64xf32>
    %c2_124 = arith.constant 2 : index
    %c7_125 = arith.constant 7 : index
    %192 = vector.load %arg7[%c2_124, %c7_125] : memref<18x80xf32, #tpu.memory_space<vmem>>, vector<16x64xf32>
    %c36 = arith.constant 36 : index
    %c0_126 = arith.constant 0 : index
    %193 = vector.load %arg2[%c36, %c0_126] : memref<45x64xf32, #tpu.memory_space<vmem>>, vector<1x64xf32>
    %194 = vector.broadcast %193 : vector<1x64xf32> to vector<16x64xf32>
    %195 = arith.mulf %192, %194 : vector<16x64xf32>
    %196 = arith.addf %191, %195 : vector<16x64xf32>
    %c2_127 = arith.constant 2 : index
    %c8_128 = arith.constant 8 : index
    %197 = vector.load %arg7[%c2_127, %c8_128] : memref<18x80xf32, #tpu.memory_space<vmem>>, vector<16x64xf32>
    %c37 = arith.constant 37 : index
    %c0_129 = arith.constant 0 : index
    %198 = vector.load %arg2[%c37, %c0_129] : memref<45x64xf32, #tpu.memory_space<vmem>>, vector<1x64xf32>
    %199 = vector.broadcast %198 : vector<1x64xf32> to vector<16x64xf32>
    %200 = arith.mulf %197, %199 : vector<16x64xf32>
    %201 = arith.addf %196, %200 : vector<16x64xf32>
    %c2_130 = arith.constant 2 : index
    %c9_131 = arith.constant 9 : index
    %202 = vector.load %arg7[%c2_130, %c9_131] : memref<18x80xf32, #tpu.memory_space<vmem>>, vector<16x64xf32>
    %c38 = arith.constant 38 : index
    %c0_132 = arith.constant 0 : index
    %203 = vector.load %arg2[%c38, %c0_132] : memref<45x64xf32, #tpu.memory_space<vmem>>, vector<1x64xf32>
    %204 = vector.broadcast %203 : vector<1x64xf32> to vector<16x64xf32>
    %205 = arith.mulf %202, %204 : vector<16x64xf32>
    %206 = arith.addf %201, %205 : vector<16x64xf32>
    %c2_133 = arith.constant 2 : index
    %c10_134 = arith.constant 10 : index
    %207 = vector.load %arg7[%c2_133, %c10_134] : memref<18x80xf32, #tpu.memory_space<vmem>>, vector<16x64xf32>
    %c39 = arith.constant 39 : index
    %c0_135 = arith.constant 0 : index
    %208 = vector.load %arg2[%c39, %c0_135] : memref<45x64xf32, #tpu.memory_space<vmem>>, vector<1x64xf32>
    %209 = vector.broadcast %208 : vector<1x64xf32> to vector<16x64xf32>
    %210 = arith.mulf %207, %209 : vector<16x64xf32>
    %211 = arith.addf %206, %210 : vector<16x64xf32>
    %c2_136 = arith.constant 2 : index
    %c11_137 = arith.constant 11 : index
    %212 = vector.load %arg7[%c2_136, %c11_137] : memref<18x80xf32, #tpu.memory_space<vmem>>, vector<16x64xf32>
    %c40 = arith.constant 40 : index
    %c0_138 = arith.constant 0 : index
    %213 = vector.load %arg2[%c40, %c0_138] : memref<45x64xf32, #tpu.memory_space<vmem>>, vector<1x64xf32>
    %214 = vector.broadcast %213 : vector<1x64xf32> to vector<16x64xf32>
    %215 = arith.mulf %212, %214 : vector<16x64xf32>
    %216 = arith.addf %211, %215 : vector<16x64xf32>
    %c2_139 = arith.constant 2 : index
    %c12_140 = arith.constant 12 : index
    %217 = vector.load %arg7[%c2_139, %c12_140] : memref<18x80xf32, #tpu.memory_space<vmem>>, vector<16x64xf32>
    %c41 = arith.constant 41 : index
    %c0_141 = arith.constant 0 : index
    %218 = vector.load %arg2[%c41, %c0_141] : memref<45x64xf32, #tpu.memory_space<vmem>>, vector<1x64xf32>
    %219 = vector.broadcast %218 : vector<1x64xf32> to vector<16x64xf32>
    %220 = arith.mulf %217, %219 : vector<16x64xf32>
    %221 = arith.addf %216, %220 : vector<16x64xf32>
    %c2_142 = arith.constant 2 : index
    %c13_143 = arith.constant 13 : index
    %222 = vector.load %arg7[%c2_142, %c13_143] : memref<18x80xf32, #tpu.memory_space<vmem>>, vector<16x64xf32>
    %c42 = arith.constant 42 : index
    %c0_144 = arith.constant 0 : index
    %223 = vector.load %arg2[%c42, %c0_144] : memref<45x64xf32, #tpu.memory_space<vmem>>, vector<1x64xf32>
    %224 = vector.broadcast %223 : vector<1x64xf32> to vector<16x64xf32>
    %225 = arith.mulf %222, %224 : vector<16x64xf32>
    %226 = arith.addf %221, %225 : vector<16x64xf32>
    %c2_145 = arith.constant 2 : index
    %c14_146 = arith.constant 14 : index
    %227 = vector.load %arg7[%c2_145, %c14_146] : memref<18x80xf32, #tpu.memory_space<vmem>>, vector<16x64xf32>
    %c43 = arith.constant 43 : index
    %c0_147 = arith.constant 0 : index
    %228 = vector.load %arg2[%c43, %c0_147] : memref<45x64xf32, #tpu.memory_space<vmem>>, vector<1x64xf32>
    %229 = vector.broadcast %228 : vector<1x64xf32> to vector<16x64xf32>
    %230 = arith.mulf %227, %229 : vector<16x64xf32>
    %231 = arith.addf %226, %230 : vector<16x64xf32>
    %c2_148 = arith.constant 2 : index
    %c15_149 = arith.constant 15 : index
    %232 = vector.load %arg7[%c2_148, %c15_149] : memref<18x80xf32, #tpu.memory_space<vmem>>, vector<16x64xf32>
    %c44 = arith.constant 44 : index
    %c0_150 = arith.constant 0 : index
    %233 = vector.load %arg2[%c44, %c0_150] : memref<45x64xf32, #tpu.memory_space<vmem>>, vector<1x64xf32>
    %234 = vector.broadcast %233 : vector<1x64xf32> to vector<16x64xf32>
    %235 = arith.mulf %232, %234 : vector<16x64xf32>
    %236 = arith.addf %231, %235 : vector<16x64xf32>
    %c0_151 = arith.constant 0 : index
    %c0_152 = arith.constant 0 : index
    %237 = vector.load %arg3[%c0_151, %c0_152] : memref<1x64xf32, #tpu.memory_space<vmem>>, vector<1x64xf32>
    %238 = vector.broadcast %237 : vector<1x64xf32> to vector<16x64xf32>
    %239 = arith.addf %236, %238 : vector<16x64xf32>
    %cst_153 = arith.constant 0.000000e+00 : f32
    %240 = vector.broadcast %cst_153 : f32 to vector<16x64xf32>
    %241 = arith.maximumf %239, %240 : vector<16x64xf32>
    %c1_154 = arith.constant 1 : index
    %c8_155 = arith.constant 8 : index
    %242 = vector.load %arg7[%c1_154, %c8_155] : memref<18x80xf32, #tpu.memory_space<vmem>>, vector<16x64xf32>
    tpu.vector_store %arg7[%c1_154, %c8_155], %241 {strides = array<i32>} : memref<18x80xf32, #tpu.memory_space<vmem>>, vector<16x64xf32>,
    %cst_156 = arith.constant 0.000000e+00 : f32
    %243 = vector.broadcast %cst_156 : f32 to vector<16x64xf32>
    %c0_157 = arith.constant 0 : index
    %c1_158 = arith.constant 1 : index
    %244 = vector.load %arg7[%c0_157, %c1_158] : memref<18x80xf32, #tpu.memory_space<vmem>>, vector<16x64xf32>
    %c0_159 = arith.constant 0 : index
    %c0_160 = arith.constant 0 : index
    %245 = vector.load %arg4[%c0_159, %c0_160] : memref<45x64xf32, #tpu.memory_space<vmem>>, vector<1x64xf32>
    %246 = vector.broadcast %245 : vector<1x64xf32> to vector<16x64xf32>
    %247 = arith.mulf %244, %246 : vector<16x64xf32>
    %248 = arith.addf %243, %247 : vector<16x64xf32>
    %c0_161 = arith.constant 0 : index
    %c2_162 = arith.constant 2 : index
    %249 = vector.load %arg7[%c0_161, %c2_162] : memref<18x80xf32, #tpu.memory_space<vmem>>, vector<16x64xf32>
    %c1_163 = arith.constant 1 : index
    %c0_164 = arith.constant 0 : index
    %250 = vector.load %arg4[%c1_163, %c0_164] : memref<45x64xf32, #tpu.memory_space<vmem>>, vector<1x64xf32>
    %251 = vector.broadcast %250 : vector<1x64xf32> to vector<16x64xf32>
    %252 = arith.mulf %249, %251 : vector<16x64xf32>
    %253 = arith.addf %248, %252 : vector<16x64xf32>
    %c0_165 = arith.constant 0 : index
    %c3_166 = arith.constant 3 : index
    %254 = vector.load %arg7[%c0_165, %c3_166] : memref<18x80xf32, #tpu.memory_space<vmem>>, vector<16x64xf32>
    %c2_167 = arith.constant 2 : index
    %c0_168 = arith.constant 0 : index
    %255 = vector.load %arg4[%c2_167, %c0_168] : memref<45x64xf32, #tpu.memory_space<vmem>>, vector<1x64xf32>
    %256 = vector.broadcast %255 : vector<1x64xf32> to vector<16x64xf32>
    %257 = arith.mulf %254, %256 : vector<16x64xf32>
    %258 = arith.addf %253, %257 : vector<16x64xf32>
    %c0_169 = arith.constant 0 : index
    %c4_170 = arith.constant 4 : index
    %259 = vector.load %arg7[%c0_169, %c4_170] : memref<18x80xf32, #tpu.memory_space<vmem>>, vector<16x64xf32>
    %c3_171 = arith.constant 3 : index
    %c0_172 = arith.constant 0 : index
    %260 = vector.load %arg4[%c3_171, %c0_172] : memref<45x64xf32, #tpu.memory_space<vmem>>, vector<1x64xf32>
    %261 = vector.broadcast %260 : vector<1x64xf32> to vector<16x64xf32>
    %262 = arith.mulf %259, %261 : vector<16x64xf32>
    %263 = arith.addf %258, %262 : vector<16x64xf32>
    %c0_173 = arith.constant 0 : index
    %c5_174 = arith.constant 5 : index
    %264 = vector.load %arg7[%c0_173, %c5_174] : memref<18x80xf32, #tpu.memory_space<vmem>>, vector<16x64xf32>
    %c4_175 = arith.constant 4 : index
    %c0_176 = arith.constant 0 : index
    %265 = vector.load %arg4[%c4_175, %c0_176] : memref<45x64xf32, #tpu.memory_space<vmem>>, vector<1x64xf32>
    %266 = vector.broadcast %265 : vector<1x64xf32> to vector<16x64xf32>
    %267 = arith.mulf %264, %266 : vector<16x64xf32>
    %268 = arith.addf %263, %267 : vector<16x64xf32>
    %c0_177 = arith.constant 0 : index
    %c6_178 = arith.constant 6 : index
    %269 = vector.load %arg7[%c0_177, %c6_178] : memref<18x80xf32, #tpu.memory_space<vmem>>, vector<16x64xf32>
    %c5_179 = arith.constant 5 : index
    %c0_180 = arith.constant 0 : index
    %270 = vector.load %arg4[%c5_179, %c0_180] : memref<45x64xf32, #tpu.memory_space<vmem>>, vector<1x64xf32>
    %271 = vector.broadcast %270 : vector<1x64xf32> to vector<16x64xf32>
    %272 = arith.mulf %269, %271 : vector<16x64xf32>
    %273 = arith.addf %268, %272 : vector<16x64xf32>
    %c0_181 = arith.constant 0 : index
    %c7_182 = arith.constant 7 : index
    %274 = vector.load %arg7[%c0_181, %c7_182] : memref<18x80xf32, #tpu.memory_space<vmem>>, vector<16x64xf32>
    %c6_183 = arith.constant 6 : index
    %c0_184 = arith.constant 0 : index
    %275 = vector.load %arg4[%c6_183, %c0_184] : memref<45x64xf32, #tpu.memory_space<vmem>>, vector<1x64xf32>
    %276 = vector.broadcast %275 : vector<1x64xf32> to vector<16x64xf32>
    %277 = arith.mulf %274, %276 : vector<16x64xf32>
    %278 = arith.addf %273, %277 : vector<16x64xf32>
    %c0_185 = arith.constant 0 : index
    %c8_186 = arith.constant 8 : index
    %279 = vector.load %arg7[%c0_185, %c8_186] : memref<18x80xf32, #tpu.memory_space<vmem>>, vector<16x64xf32>
    %c7_187 = arith.constant 7 : index
    %c0_188 = arith.constant 0 : index
    %280 = vector.load %arg4[%c7_187, %c0_188] : memref<45x64xf32, #tpu.memory_space<vmem>>, vector<1x64xf32>
    %281 = vector.broadcast %280 : vector<1x64xf32> to vector<16x64xf32>
    %282 = arith.mulf %279, %281 : vector<16x64xf32>
    %283 = arith.addf %278, %282 : vector<16x64xf32>
    %c0_189 = arith.constant 0 : index
    %c9_190 = arith.constant 9 : index
    %284 = vector.load %arg7[%c0_189, %c9_190] : memref<18x80xf32, #tpu.memory_space<vmem>>, vector<16x64xf32>
    %c8_191 = arith.constant 8 : index
    %c0_192 = arith.constant 0 : index
    %285 = vector.load %arg4[%c8_191, %c0_192] : memref<45x64xf32, #tpu.memory_space<vmem>>, vector<1x64xf32>
    %286 = vector.broadcast %285 : vector<1x64xf32> to vector<16x64xf32>
    %287 = arith.mulf %284, %286 : vector<16x64xf32>
    %288 = arith.addf %283, %287 : vector<16x64xf32>
    %c0_193 = arith.constant 0 : index
    %c10_194 = arith.constant 10 : index
    %289 = vector.load %arg7[%c0_193, %c10_194] : memref<18x80xf32, #tpu.memory_space<vmem>>, vector<16x64xf32>
    %c9_195 = arith.constant 9 : index
    %c0_196 = arith.constant 0 : index
    %290 = vector.load %arg4[%c9_195, %c0_196] : memref<45x64xf32, #tpu.memory_space<vmem>>, vector<1x64xf32>
    %291 = vector.broadcast %290 : vector<1x64xf32> to vector<16x64xf32>
    %292 = arith.mulf %289, %291 : vector<16x64xf32>
    %293 = arith.addf %288, %292 : vector<16x64xf32>
    %c0_197 = arith.constant 0 : index
    %c11_198 = arith.constant 11 : index
    %294 = vector.load %arg7[%c0_197, %c11_198] : memref<18x80xf32, #tpu.memory_space<vmem>>, vector<16x64xf32>
    %c10_199 = arith.constant 10 : index
    %c0_200 = arith.constant 0 : index
    %295 = vector.load %arg4[%c10_199, %c0_200] : memref<45x64xf32, #tpu.memory_space<vmem>>, vector<1x64xf32>
    %296 = vector.broadcast %295 : vector<1x64xf32> to vector<16x64xf32>
    %297 = arith.mulf %294, %296 : vector<16x64xf32>
    %298 = arith.addf %293, %297 : vector<16x64xf32>
    %c0_201 = arith.constant 0 : index
    %c12_202 = arith.constant 12 : index
    %299 = vector.load %arg7[%c0_201, %c12_202] : memref<18x80xf32, #tpu.memory_space<vmem>>, vector<16x64xf32>
    %c11_203 = arith.constant 11 : index
    %c0_204 = arith.constant 0 : index
    %300 = vector.load %arg4[%c11_203, %c0_204] : memref<45x64xf32, #tpu.memory_space<vmem>>, vector<1x64xf32>
    %301 = vector.broadcast %300 : vector<1x64xf32> to vector<16x64xf32>
    %302 = arith.mulf %299, %301 : vector<16x64xf32>
    %303 = arith.addf %298, %302 : vector<16x64xf32>
    %c0_205 = arith.constant 0 : index
    %c13_206 = arith.constant 13 : index
    %304 = vector.load %arg7[%c0_205, %c13_206] : memref<18x80xf32, #tpu.memory_space<vmem>>, vector<16x64xf32>
    %c12_207 = arith.constant 12 : index
    %c0_208 = arith.constant 0 : index
    %305 = vector.load %arg4[%c12_207, %c0_208] : memref<45x64xf32, #tpu.memory_space<vmem>>, vector<1x64xf32>
    %306 = vector.broadcast %305 : vector<1x64xf32> to vector<16x64xf32>
    %307 = arith.mulf %304, %306 : vector<16x64xf32>
    %308 = arith.addf %303, %307 : vector<16x64xf32>
    %c0_209 = arith.constant 0 : index
    %c14_210 = arith.constant 14 : index
    %309 = vector.load %arg7[%c0_209, %c14_210] : memref<18x80xf32, #tpu.memory_space<vmem>>, vector<16x64xf32>
    %c13_211 = arith.constant 13 : index
    %c0_212 = arith.constant 0 : index
    %310 = vector.load %arg4[%c13_211, %c0_212] : memref<45x64xf32, #tpu.memory_space<vmem>>, vector<1x64xf32>
    %311 = vector.broadcast %310 : vector<1x64xf32> to vector<16x64xf32>
    %312 = arith.mulf %309, %311 : vector<16x64xf32>
    %313 = arith.addf %308, %312 : vector<16x64xf32>
    %c0_213 = arith.constant 0 : index
    %c15_214 = arith.constant 15 : index
    %314 = vector.load %arg7[%c0_213, %c15_214] : memref<18x80xf32, #tpu.memory_space<vmem>>, vector<16x64xf32>
    %c14_215 = arith.constant 14 : index
    %c0_216 = arith.constant 0 : index
    %315 = vector.load %arg4[%c14_215, %c0_216] : memref<45x64xf32, #tpu.memory_space<vmem>>, vector<1x64xf32>
    %316 = vector.broadcast %315 : vector<1x64xf32> to vector<16x64xf32>
    %317 = arith.mulf %314, %316 : vector<16x64xf32>
    %318 = arith.addf %313, %317 : vector<16x64xf32>
    %c1_217 = arith.constant 1 : index
    %c1_218 = arith.constant 1 : index
    %319 = vector.load %arg7[%c1_217, %c1_218] : memref<18x80xf32, #tpu.memory_space<vmem>>, vector<16x64xf32>
    %c15_219 = arith.constant 15 : index
    %c0_220 = arith.constant 0 : index
    %320 = vector.load %arg4[%c15_219, %c0_220] : memref<45x64xf32, #tpu.memory_space<vmem>>, vector<1x64xf32>
    %321 = vector.broadcast %320 : vector<1x64xf32> to vector<16x64xf32>
    %322 = arith.mulf %319, %321 : vector<16x64xf32>
    %323 = arith.addf %318, %322 : vector<16x64xf32>
    %c1_221 = arith.constant 1 : index
    %c2_222 = arith.constant 2 : index
    %324 = vector.load %arg7[%c1_221, %c2_222] : memref<18x80xf32, #tpu.memory_space<vmem>>, vector<16x64xf32>
    %c16_223 = arith.constant 16 : index
    %c0_224 = arith.constant 0 : index
    %325 = vector.load %arg4[%c16_223, %c0_224] : memref<45x64xf32, #tpu.memory_space<vmem>>, vector<1x64xf32>
    %326 = vector.broadcast %325 : vector<1x64xf32> to vector<16x64xf32>
    %327 = arith.mulf %324, %326 : vector<16x64xf32>
    %328 = arith.addf %323, %327 : vector<16x64xf32>
    %c1_225 = arith.constant 1 : index
    %c3_226 = arith.constant 3 : index
    %329 = vector.load %arg7[%c1_225, %c3_226] : memref<18x80xf32, #tpu.memory_space<vmem>>, vector<16x64xf32>
    %c17_227 = arith.constant 17 : index
    %c0_228 = arith.constant 0 : index
    %330 = vector.load %arg4[%c17_227, %c0_228] : memref<45x64xf32, #tpu.memory_space<vmem>>, vector<1x64xf32>
    %331 = vector.broadcast %330 : vector<1x64xf32> to vector<16x64xf32>
    %332 = arith.mulf %329, %331 : vector<16x64xf32>
    %333 = arith.addf %328, %332 : vector<16x64xf32>
    %c1_229 = arith.constant 1 : index
    %c4_230 = arith.constant 4 : index
    %334 = vector.load %arg7[%c1_229, %c4_230] : memref<18x80xf32, #tpu.memory_space<vmem>>, vector<16x64xf32>
    %c18_231 = arith.constant 18 : index
    %c0_232 = arith.constant 0 : index
    %335 = vector.load %arg4[%c18_231, %c0_232] : memref<45x64xf32, #tpu.memory_space<vmem>>, vector<1x64xf32>
    %336 = vector.broadcast %335 : vector<1x64xf32> to vector<16x64xf32>
    %337 = arith.mulf %334, %336 : vector<16x64xf32>
    %338 = arith.addf %333, %337 : vector<16x64xf32>
    %c1_233 = arith.constant 1 : index
    %c5_234 = arith.constant 5 : index
    %339 = vector.load %arg7[%c1_233, %c5_234] : memref<18x80xf32, #tpu.memory_space<vmem>>, vector<16x64xf32>
    %c19_235 = arith.constant 19 : index
    %c0_236 = arith.constant 0 : index
    %340 = vector.load %arg4[%c19_235, %c0_236] : memref<45x64xf32, #tpu.memory_space<vmem>>, vector<1x64xf32>
    %341 = vector.broadcast %340 : vector<1x64xf32> to vector<16x64xf32>
    %342 = arith.mulf %339, %341 : vector<16x64xf32>
    %343 = arith.addf %338, %342 : vector<16x64xf32>
    %c1_237 = arith.constant 1 : index
    %c6_238 = arith.constant 6 : index
    %344 = vector.load %arg7[%c1_237, %c6_238] : memref<18x80xf32, #tpu.memory_space<vmem>>, vector<16x64xf32>
    %c20_239 = arith.constant 20 : index
    %c0_240 = arith.constant 0 : index
    %345 = vector.load %arg4[%c20_239, %c0_240] : memref<45x64xf32, #tpu.memory_space<vmem>>, vector<1x64xf32>
    %346 = vector.broadcast %345 : vector<1x64xf32> to vector<16x64xf32>
    %347 = arith.mulf %344, %346 : vector<16x64xf32>
    %348 = arith.addf %343, %347 : vector<16x64xf32>
    %c1_241 = arith.constant 1 : index
    %c7_242 = arith.constant 7 : index
    %349 = vector.load %arg7[%c1_241, %c7_242] : memref<18x80xf32, #tpu.memory_space<vmem>>, vector<16x64xf32>
    %c21_243 = arith.constant 21 : index
    %c0_244 = arith.constant 0 : index
    %350 = vector.load %arg4[%c21_243, %c0_244] : memref<45x64xf32, #tpu.memory_space<vmem>>, vector<1x64xf32>
    %351 = vector.broadcast %350 : vector<1x64xf32> to vector<16x64xf32>
    %352 = arith.mulf %349, %351 : vector<16x64xf32>
    %353 = arith.addf %348, %352 : vector<16x64xf32>
    %c1_245 = arith.constant 1 : index
    %c8_246 = arith.constant 8 : index
    %354 = vector.load %arg7[%c1_245, %c8_246] : memref<18x80xf32, #tpu.memory_space<vmem>>, vector<16x64xf32>
    %c22_247 = arith.constant 22 : index
    %c0_248 = arith.constant 0 : index
    %355 = vector.load %arg4[%c22_247, %c0_248] : memref<45x64xf32, #tpu.memory_space<vmem>>, vector<1x64xf32>
    %356 = vector.broadcast %355 : vector<1x64xf32> to vector<16x64xf32>
    %357 = arith.mulf %354, %356 : vector<16x64xf32>
    %358 = arith.addf %353, %357 : vector<16x64xf32>
    %c1_249 = arith.constant 1 : index
    %c9_250 = arith.constant 9 : index
    %359 = vector.load %arg7[%c1_249, %c9_250] : memref<18x80xf32, #tpu.memory_space<vmem>>, vector<16x64xf32>
    %c23_251 = arith.constant 23 : index
    %c0_252 = arith.constant 0 : index
    %360 = vector.load %arg4[%c23_251, %c0_252] : memref<45x64xf32, #tpu.memory_space<vmem>>, vector<1x64xf32>
    %361 = vector.broadcast %360 : vector<1x64xf32> to vector<16x64xf32>
    %362 = arith.mulf %359, %361 : vector<16x64xf32>
    %363 = arith.addf %358, %362 : vector<16x64xf32>
    %c1_253 = arith.constant 1 : index
    %c10_254 = arith.constant 10 : index
    %364 = vector.load %arg7[%c1_253, %c10_254] : memref<18x80xf32, #tpu.memory_space<vmem>>, vector<16x64xf32>
    %c24_255 = arith.constant 24 : index
    %c0_256 = arith.constant 0 : index
    %365 = vector.load %arg4[%c24_255, %c0_256] : memref<45x64xf32, #tpu.memory_space<vmem>>, vector<1x64xf32>
    %366 = vector.broadcast %365 : vector<1x64xf32> to vector<16x64xf32>
    %367 = arith.mulf %364, %366 : vector<16x64xf32>
    %368 = arith.addf %363, %367 : vector<16x64xf32>
    %c1_257 = arith.constant 1 : index
    %c11_258 = arith.constant 11 : index
    %369 = vector.load %arg7[%c1_257, %c11_258] : memref<18x80xf32, #tpu.memory_space<vmem>>, vector<16x64xf32>
    %c25_259 = arith.constant 25 : index
    %c0_260 = arith.constant 0 : index
    %370 = vector.load %arg4[%c25_259, %c0_260] : memref<45x64xf32, #tpu.memory_space<vmem>>, vector<1x64xf32>
    %371 = vector.broadcast %370 : vector<1x64xf32> to vector<16x64xf32>
    %372 = arith.mulf %369, %371 : vector<16x64xf32>
    %373 = arith.addf %368, %372 : vector<16x64xf32>
    %c1_261 = arith.constant 1 : index
    %c12_262 = arith.constant 12 : index
    %374 = vector.load %arg7[%c1_261, %c12_262] : memref<18x80xf32, #tpu.memory_space<vmem>>, vector<16x64xf32>
    %c26_263 = arith.constant 26 : index
    %c0_264 = arith.constant 0 : index
    %375 = vector.load %arg4[%c26_263, %c0_264] : memref<45x64xf32, #tpu.memory_space<vmem>>, vector<1x64xf32>
    %376 = vector.broadcast %375 : vector<1x64xf32> to vector<16x64xf32>
    %377 = arith.mulf %374, %376 : vector<16x64xf32>
    %378 = arith.addf %373, %377 : vector<16x64xf32>
    %c1_265 = arith.constant 1 : index
    %c13_266 = arith.constant 13 : index
    %379 = vector.load %arg7[%c1_265, %c13_266] : memref<18x80xf32, #tpu.memory_space<vmem>>, vector<16x64xf32>
    %c27_267 = arith.constant 27 : index
    %c0_268 = arith.constant 0 : index
    %380 = vector.load %arg4[%c27_267, %c0_268] : memref<45x64xf32, #tpu.memory_space<vmem>>, vector<1x64xf32>
    %381 = vector.broadcast %380 : vector<1x64xf32> to vector<16x64xf32>
    %382 = arith.mulf %379, %381 : vector<16x64xf32>
    %383 = arith.addf %378, %382 : vector<16x64xf32>
    %c1_269 = arith.constant 1 : index
    %c14_270 = arith.constant 14 : index
    %384 = vector.load %arg7[%c1_269, %c14_270] : memref<18x80xf32, #tpu.memory_space<vmem>>, vector<16x64xf32>
    %c28_271 = arith.constant 28 : index
    %c0_272 = arith.constant 0 : index
    %385 = vector.load %arg4[%c28_271, %c0_272] : memref<45x64xf32, #tpu.memory_space<vmem>>, vector<1x64xf32>
    %386 = vector.broadcast %385 : vector<1x64xf32> to vector<16x64xf32>
    %387 = arith.mulf %384, %386 : vector<16x64xf32>
    %388 = arith.addf %383, %387 : vector<16x64xf32>
    %c1_273 = arith.constant 1 : index
    %c15_274 = arith.constant 15 : index
    %389 = vector.load %arg7[%c1_273, %c15_274] : memref<18x80xf32, #tpu.memory_space<vmem>>, vector<16x64xf32>
    %c29_275 = arith.constant 29 : index
    %c0_276 = arith.constant 0 : index
    %390 = vector.load %arg4[%c29_275, %c0_276] : memref<45x64xf32, #tpu.memory_space<vmem>>, vector<1x64xf32>
    %391 = vector.broadcast %390 : vector<1x64xf32> to vector<16x64xf32>
    %392 = arith.mulf %389, %391 : vector<16x64xf32>
    %393 = arith.addf %388, %392 : vector<16x64xf32>
    %c2_277 = arith.constant 2 : index
    %c1_278 = arith.constant 1 : index
    %394 = vector.load %arg7[%c2_277, %c1_278] : memref<18x80xf32, #tpu.memory_space<vmem>>, vector<16x64xf32>
    %c30_279 = arith.constant 30 : index
    %c0_280 = arith.constant 0 : index
    %395 = vector.load %arg4[%c30_279, %c0_280] : memref<45x64xf32, #tpu.memory_space<vmem>>, vector<1x64xf32>
    %396 = vector.broadcast %395 : vector<1x64xf32> to vector<16x64xf32>
    %397 = arith.mulf %394, %396 : vector<16x64xf32>
    %398 = arith.addf %393, %397 : vector<16x64xf32>
    %c2_281 = arith.constant 2 : index
    %c2_282 = arith.constant 2 : index
    %399 = vector.load %arg7[%c2_281, %c2_282] : memref<18x80xf32, #tpu.memory_space<vmem>>, vector<16x64xf32>
    %c31_283 = arith.constant 31 : index
    %c0_284 = arith.constant 0 : index
    %400 = vector.load %arg4[%c31_283, %c0_284] : memref<45x64xf32, #tpu.memory_space<vmem>>, vector<1x64xf32>
    %401 = vector.broadcast %400 : vector<1x64xf32> to vector<16x64xf32>
    %402 = arith.mulf %399, %401 : vector<16x64xf32>
    %403 = arith.addf %398, %402 : vector<16x64xf32>
    %c2_285 = arith.constant 2 : index
    %c3_286 = arith.constant 3 : index
    %404 = vector.load %arg7[%c2_285, %c3_286] : memref<18x80xf32, #tpu.memory_space<vmem>>, vector<16x64xf32>
    %c32_287 = arith.constant 32 : index
    %c0_288 = arith.constant 0 : index
    %405 = vector.load %arg4[%c32_287, %c0_288] : memref<45x64xf32, #tpu.memory_space<vmem>>, vector<1x64xf32>
    %406 = vector.broadcast %405 : vector<1x64xf32> to vector<16x64xf32>
    %407 = arith.mulf %404, %406 : vector<16x64xf32>
    %408 = arith.addf %403, %407 : vector<16x64xf32>
    %c2_289 = arith.constant 2 : index
    %c4_290 = arith.constant 4 : index
    %409 = vector.load %arg7[%c2_289, %c4_290] : memref<18x80xf32, #tpu.memory_space<vmem>>, vector<16x64xf32>
    %c33_291 = arith.constant 33 : index
    %c0_292 = arith.constant 0 : index
    %410 = vector.load %arg4[%c33_291, %c0_292] : memref<45x64xf32, #tpu.memory_space<vmem>>, vector<1x64xf32>
    %411 = vector.broadcast %410 : vector<1x64xf32> to vector<16x64xf32>
    %412 = arith.mulf %409, %411 : vector<16x64xf32>
    %413 = arith.addf %408, %412 : vector<16x64xf32>
    %c2_293 = arith.constant 2 : index
    %c5_294 = arith.constant 5 : index
    %414 = vector.load %arg7[%c2_293, %c5_294] : memref<18x80xf32, #tpu.memory_space<vmem>>, vector<16x64xf32>
    %c34_295 = arith.constant 34 : index
    %c0_296 = arith.constant 0 : index
    %415 = vector.load %arg4[%c34_295, %c0_296] : memref<45x64xf32, #tpu.memory_space<vmem>>, vector<1x64xf32>
    %416 = vector.broadcast %415 : vector<1x64xf32> to vector<16x64xf32>
    %417 = arith.mulf %414, %416 : vector<16x64xf32>
    %418 = arith.addf %413, %417 : vector<16x64xf32>
    %c2_297 = arith.constant 2 : index
    %c6_298 = arith.constant 6 : index
    %419 = vector.load %arg7[%c2_297, %c6_298] : memref<18x80xf32, #tpu.memory_space<vmem>>, vector<16x64xf32>
    %c35_299 = arith.constant 35 : index
    %c0_300 = arith.constant 0 : index
    %420 = vector.load %arg4[%c35_299, %c0_300] : memref<45x64xf32, #tpu.memory_space<vmem>>, vector<1x64xf32>
    %421 = vector.broadcast %420 : vector<1x64xf32> to vector<16x64xf32>
    %422 = arith.mulf %419, %421 : vector<16x64xf32>
    %423 = arith.addf %418, %422 : vector<16x64xf32>
    %c2_301 = arith.constant 2 : index
    %c7_302 = arith.constant 7 : index
    %424 = vector.load %arg7[%c2_301, %c7_302] : memref<18x80xf32, #tpu.memory_space<vmem>>, vector<16x64xf32>
    %c36_303 = arith.constant 36 : index
    %c0_304 = arith.constant 0 : index
    %425 = vector.load %arg4[%c36_303, %c0_304] : memref<45x64xf32, #tpu.memory_space<vmem>>, vector<1x64xf32>
    %426 = vector.broadcast %425 : vector<1x64xf32> to vector<16x64xf32>
    %427 = arith.mulf %424, %426 : vector<16x64xf32>
    %428 = arith.addf %423, %427 : vector<16x64xf32>
    %c2_305 = arith.constant 2 : index
    %c8_306 = arith.constant 8 : index
    %429 = vector.load %arg7[%c2_305, %c8_306] : memref<18x80xf32, #tpu.memory_space<vmem>>, vector<16x64xf32>
    %c37_307 = arith.constant 37 : index
    %c0_308 = arith.constant 0 : index
    %430 = vector.load %arg4[%c37_307, %c0_308] : memref<45x64xf32, #tpu.memory_space<vmem>>, vector<1x64xf32>
    %431 = vector.broadcast %430 : vector<1x64xf32> to vector<16x64xf32>
    %432 = arith.mulf %429, %431 : vector<16x64xf32>
    %433 = arith.addf %428, %432 : vector<16x64xf32>
    %c2_309 = arith.constant 2 : index
    %c9_310 = arith.constant 9 : index
    %434 = vector.load %arg7[%c2_309, %c9_310] : memref<18x80xf32, #tpu.memory_space<vmem>>, vector<16x64xf32>
    %c38_311 = arith.constant 38 : index
    %c0_312 = arith.constant 0 : index
    %435 = vector.load %arg4[%c38_311, %c0_312] : memref<45x64xf32, #tpu.memory_space<vmem>>, vector<1x64xf32>
    %436 = vector.broadcast %435 : vector<1x64xf32> to vector<16x64xf32>
    %437 = arith.mulf %434, %436 : vector<16x64xf32>
    %438 = arith.addf %433, %437 : vector<16x64xf32>
    %c2_313 = arith.constant 2 : index
    %c10_314 = arith.constant 10 : index
    %439 = vector.load %arg7[%c2_313, %c10_314] : memref<18x80xf32, #tpu.memory_space<vmem>>, vector<16x64xf32>
    %c39_315 = arith.constant 39 : index
    %c0_316 = arith.constant 0 : index
    %440 = vector.load %arg4[%c39_315, %c0_316] : memref<45x64xf32, #tpu.memory_space<vmem>>, vector<1x64xf32>
    %441 = vector.broadcast %440 : vector<1x64xf32> to vector<16x64xf32>
    %442 = arith.mulf %439, %441 : vector<16x64xf32>
    %443 = arith.addf %438, %442 : vector<16x64xf32>
    %c2_317 = arith.constant 2 : index
    %c11_318 = arith.constant 11 : index
    %444 = vector.load %arg7[%c2_317, %c11_318] : memref<18x80xf32, #tpu.memory_space<vmem>>, vector<16x64xf32>
    %c40_319 = arith.constant 40 : index
    %c0_320 = arith.constant 0 : index
    %445 = vector.load %arg4[%c40_319, %c0_320] : memref<45x64xf32, #tpu.memory_space<vmem>>, vector<1x64xf32>
    %446 = vector.broadcast %445 : vector<1x64xf32> to vector<16x64xf32>
    %447 = arith.mulf %444, %446 : vector<16x64xf32>
    %448 = arith.addf %443, %447 : vector<16x64xf32>
    %c2_321 = arith.constant 2 : index
    %c12_322 = arith.constant 12 : index
    %449 = vector.load %arg7[%c2_321, %c12_322] : memref<18x80xf32, #tpu.memory_space<vmem>>, vector<16x64xf32>
    %c41_323 = arith.constant 41 : index
    %c0_324 = arith.constant 0 : index
    %450 = vector.load %arg4[%c41_323, %c0_324] : memref<45x64xf32, #tpu.memory_space<vmem>>, vector<1x64xf32>
    %451 = vector.broadcast %450 : vector<1x64xf32> to vector<16x64xf32>
    %452 = arith.mulf %449, %451 : vector<16x64xf32>
    %453 = arith.addf %448, %452 : vector<16x64xf32>
    %c2_325 = arith.constant 2 : index
    %c13_326 = arith.constant 13 : index
    %454 = vector.load %arg7[%c2_325, %c13_326] : memref<18x80xf32, #tpu.memory_space<vmem>>, vector<16x64xf32>
    %c42_327 = arith.constant 42 : index
    %c0_328 = arith.constant 0 : index
    %455 = vector.load %arg4[%c42_327, %c0_328] : memref<45x64xf32, #tpu.memory_space<vmem>>, vector<1x64xf32>
    %456 = vector.broadcast %455 : vector<1x64xf32> to vector<16x64xf32>
    %457 = arith.mulf %454, %456 : vector<16x64xf32>
    %458 = arith.addf %453, %457 : vector<16x64xf32>
    %c2_329 = arith.constant 2 : index
    %c14_330 = arith.constant 14 : index
    %459 = vector.load %arg7[%c2_329, %c14_330] : memref<18x80xf32, #tpu.memory_space<vmem>>, vector<16x64xf32>
    %c43_331 = arith.constant 43 : index
    %c0_332 = arith.constant 0 : index
    %460 = vector.load %arg4[%c43_331, %c0_332] : memref<45x64xf32, #tpu.memory_space<vmem>>, vector<1x64xf32>
    %461 = vector.broadcast %460 : vector<1x64xf32> to vector<16x64xf32>
    %462 = arith.mulf %459, %461 : vector<16x64xf32>
    %463 = arith.addf %458, %462 : vector<16x64xf32>
    %c2_333 = arith.constant 2 : index
    %c15_334 = arith.constant 15 : index
    %464 = vector.load %arg7[%c2_333, %c15_334] : memref<18x80xf32, #tpu.memory_space<vmem>>, vector<16x64xf32>
    %c44_335 = arith.constant 44 : index
    %c0_336 = arith.constant 0 : index
    %465 = vector.load %arg4[%c44_335, %c0_336] : memref<45x64xf32, #tpu.memory_space<vmem>>, vector<1x64xf32>
    %466 = vector.broadcast %465 : vector<1x64xf32> to vector<16x64xf32>
    %467 = arith.mulf %464, %466 : vector<16x64xf32>
    %468 = arith.addf %463, %467 : vector<16x64xf32>
    %c0_337 = arith.constant 0 : index
    %c0_338 = arith.constant 0 : index
    %469 = vector.load %arg5[%c0_337, %c0_338] : memref<1x64xf32, #tpu.memory_space<vmem>>, vector<1x64xf32>
    %470 = vector.broadcast %469 : vector<1x64xf32> to vector<16x64xf32>
    %471 = arith.addf %468, %470 : vector<16x64xf32>
    %c0_339 = arith.constant 0 : index
    %c0_340 = arith.constant 0 : index
    %c0_341 = arith.constant 0 : index
    %472 = vector.load %arg1[%c0_339, %c0_340, %c0_341] : memref<1x16x64xf32, #tpu.memory_space<vmem>>, vector<1x16x64xf32>
    %473 = vector.shape_cast %472 : vector<1x16x64xf32> to vector<16x64xf32>
    %474 = arith.addf %471, %473 : vector<16x64xf32>
    %c0_342 = arith.constant 0 : index
    %c0_343 = arith.constant 0 : index
    %c0_344 = arith.constant 0 : index
    %475 = vector.load %arg6[%c0_342, %c0_343, %c0_344] : memref<1x16x64xf32, #tpu.memory_space<vmem>>, vector<1x16x64xf32>
    %476 = vector.shape_cast %475 : vector<1x16x64xf32> to vector<16x64xf32>
    %477 = vector.shape_cast %474 : vector<16x64xf32> to vector<1x16x64xf32>
    tpu.vector_store %arg6[%c0_342, %c0_343, %c0_344], %477 {strides = array<i32>} : memref<1x16x64xf32, #tpu.memory_space<vmem>>, vector<1x16x64xf32>,
    return
  }
  func.func @transform_0(%arg0: i32) -> (i32, i32, i32) {
    %c0_i32 = arith.constant 0 : i32
    %c0_i32_0 = arith.constant 0 : i32
    %c0_i32_1 = arith.constant 0 : i32
    return %arg0, %c0_i32, %c0_i32_0 : i32, i32, i32
  }
  func.func @transform_1(%arg0: i32) -> (i32, i32) {
    %c0_i32 = arith.constant 0 : i32
    %c0_i32_0 = arith.constant 0 : i32
    %c0_i32_1 = arith.constant 0 : i32
    return %c0_i32, %c0_i32_0 : i32, i32
  }
  func.func @transform_2(%arg0: i32) -> (i32, i32) {
    %c0_i32 = arith.constant 0 : i32
    %c0_i32_0 = arith.constant 0 : i32
    %c0_i32_1 = arith.constant 0 : i32
    return %c0_i32, %c0_i32_0 : i32, i32
  }
  func.func @transform_3(%arg0: i32) -> (i32, i32) {
    %c0_i32 = arith.constant 0 : i32
    %c0_i32_0 = arith.constant 0 : i32
    %c0_i32_1 = arith.constant 0 : i32
    return %c0_i32, %c0_i32_0 : i32, i32
  }
  func.func @transform_4(%arg0: i32) -> (i32, i32) {
    %c0_i32 = arith.constant 0 : i32
    %c0_i32_0 = arith.constant 0 : i32
    %c0_i32_1 = arith.constant 0 : i32
    return %c0_i32, %c0_i32_0 : i32, i32
  }
  func.func @transform_5(%arg0: i32) -> (i32, i32, i32) {
    %c0_i32 = arith.constant 0 : i32
    %c0_i32_0 = arith.constant 0 : i32
    %c0_i32_1 = arith.constant 0 : i32
    return %arg0, %c0_i32, %c0_i32_0 : i32, i32, i32
  }
}

</mosaic_0001>

<llo_original>
// kernel: tpu_custom_call.1
$region0: #{tpu_custom_call.1}
  #allocation0 [shape = 'u32[]', space=smem, size = 0x4, offset = 0x4, fixed_abs, tag = 'smem constant byte address 0x4 - core index']
  #allocation1 [shape = 'u32[144,128]{1,0:T(1,128)}', space=vmem, size = 0x12000, scoped, tag = 'internal scratch']
  #allocation2 [shape = 'f32[18,80]{1,0:T(8,128)}', space=vmem, size = 0x3000, scoped, tag = 'scratch operand']
  %s0 = inlined_call_operand.hbm [shape: f32[2,16,64], index: 0, kind: input, shape index: {}]
  %s1 = inlined_call_operand.hbm [shape: f32[45,64], index: 1, kind: input, shape index: {}]
  %s2 = inlined_call_operand.vmem [shape: f32[1,64], index: 2, kind: input, shape index: {}]
  %s3 = inlined_call_operand.hbm [shape: f32[45,64], index: 3, kind: input, shape index: {}]
  %s4 = inlined_call_operand.vmem [shape: f32[1,64], index: 4, kind: input, shape index: {}]
  %s5 = inlined_call_operand.hbm [shape: f32[2,16,64], index: 5, kind: output, shape index: {}]
  %s6 = sld [smem:[#allocation0]]
  $region65: #{tpu_custom_call.1} parent=0
    _
  %s8 = ssub.s32 1, %s6
  %s9 = scalar_select 0, %s8, %s6
  $region1: #{tpu_custom_call.1} parent=0
    #allocation3 [shape = 'u8[16384]{0}', space=vmem, size = 0x4000, scoped, tag = 'input window, operand 0']
    #allocation4 [shape = 's32[2]{0}', space=sflag, size = 0x8, scoped, tag = 'scoped memory for tpu_custom_call.1']
    #allocation5 [shape = 's32[2]{0}', space=sflag, size = 0x8, scoped, tag = 'scoped memory for tpu_custom_call.1']
    #allocation6 [shape = 'u8[24576]{0}', space=vmem, size = 0x6000, scoped, tag = 'input window, operand 1, single buffered']
    #allocation7 [shape = 's32[1]{0}', space=sflag, size = 0x4, scoped, tag = 'scoped memory for tpu_custom_call.1']
    #allocation8 [shape = 'u8[24576]{0}', space=vmem, size = 0x6000, scoped, tag = 'input window, operand 3, single buffered']
    #allocation9 [shape = 'u8[16384]{0}', space=vmem, size = 0x4000, scoped, tag = 'output window, operand 0']
    %10 = vsyncpa [#allocation4], 0
    %s11 = scalar_lea.sflag [#allocation4], 1
    %12 = vsyncpa %s11, 0
    %13 = vsyncpa [#allocation7], 0
    %14 = vsyncpa [#allocation5], 0
    %s15 = scalar_lea.sflag [#allocation5], 1
    %16 = vsyncpa %s15, 0
    loop: start=0, step=1, limit=4
    $region2: #{tpu_custom_call.1} parent=1 // loop_pre_header
      _
    $region3: #{tpu_custom_call.1} parent=1 // loop_header
      %s18 = sphi 0, %s22
      %p19 = scmp.ge.s32.totalorder %s18, 4
      %s28 = sphi 0, %s30
      %s31 = sphi 0, %s28
      %s32 = sphi 0, %s31
      %s48 = sphi 0, %s32
      %s52 = sphi 0, %s52
      %s54 = sphi 0, %s52
      %s55 = sphi 0, %s54
      %s69 = sphi 0, %s55
      %s73 = sphi 0, %s73
      %s75 = sphi 0, %s73
      %s76 = sphi 0, %s75
      %s90 = sphi 0, %s76
      %s94 = sphi 0, %s94
      %s96 = sphi 0, %s94
      %s97 = sphi 0, %s96
      %s111 = sphi 0, %s97
      %s115 = sphi 0, %s115
      %s117 = sphi 0, %s115
      %s118 = sphi 0, %s117
      %s132 = sphi 0, %s118
      %s138 = sphi 0, %s140
      %s141 = sphi 0, %s138
      %s142 = sphi 0, %s141
      %s158 = sphi 0, %s142
    $region4: #{tpu_custom_call.1} parent=1 // loop_header_branch
      %21 = sbr.rel (%p19) target = $region8
    $region5: #{tpu_custom_call.1} parent=1 // loop_body
      %s23 = ssub.s32 %s18, 1
      %s24 = ssub.s32 %s18, 2
      %s25 = sadd.s32 %s18, 1
      %s26 = ssub.s32 %s18, %s25
      %p27 = scmp.eq.s32.totalorder %s26, 0
      %s29 = sadd.s32 %s28, 1
      %s30 = scalar_select %p27, %s28, %s29
      %p33 = pneg %p27
      %p34 = scmp.eq.s32.totalorder %s18, 1
      %p35 = por %p33, %p34
      %p36 = scmp.ne.s32.totalorder %s28, %s31
      %p37 = scmp.eq.s32.totalorder %s18, 0
      %p38 = por %p36, %p37
      %p39 = scmp.ne.s32.totalorder %s28, %s31
      %p40 = scmp.eq.s32.totalorder %s23, 1
      %p41 = por %p39, %p40
      %p42 = scmp.ne.s32.totalorder %s31, %s32
      %p43 = scmp.eq.s32.totalorder %s23, 0
      %p44 = por %p42, %p43
      %p45 = scmp.ne.s32.totalorder %s31, %s32
      %p46 = scmp.eq.s32.totalorder %s24, 1
      %p47 = por %p45, %p46
      %p49 = scmp.ne.s32.totalorder %s32, %s48
      %p50 = scmp.eq.s32.totalorder %s24, 0
      %p51 = por %p49, %p50
      %s53 = sadd.s32 %s52, 1
      %p56 = scmp.eq.s32.totalorder %s18, 1
      %p57 = scmp.ne.s32.totalorder %s52, %s54
      %p58 = scmp.eq.s32.totalorder %s18, 0
      %p59 = por %p57, %p58
      %p60 = scmp.ne.s32.totalorder %s52, %s54
      %p61 = scmp.eq.s32.totalorder %s23, 1
      %p62 = por %p60, %p61
      %p63 = scmp.ne.s32.totalorder %s54, %s55
      %p64 = scmp.eq.s32.totalorder %s23, 0
      %p65 = por %p63, %p64
      %p66 = scmp.ne.s32.totalorder %s54, %s55
      %p67 = scmp.eq.s32.totalorder %s24, 1
      %p68 = por %p66, %p67
      %p70 = scmp.ne.s32.totalorder %s55, %s69
      %p71 = scmp.eq.s32.totalorder %s24, 0
      %p72 = por %p70, %p71
      %s74 = sadd.s32 %s73, 1
      %p77 = scmp.eq.s32.totalorder %s18, 1
      %p78 = scmp.ne.s32.totalorder %s73, %s75
      %p79 = scmp.eq.s32.totalorder %s18, 0
      %p80 = por %p78, %p79
      %p81 = scmp.ne.s32.totalorder %s73, %s75
      %p82 = scmp.eq.s32.totalorder %s23, 1
      %p83 = por %p81, %p82
      %p84 = scmp.ne.s32.totalorder %s75, %s76
      %p85 = scmp.eq.s32.totalorder %s23, 0
      %p86 = por %p84, %p85
      %p87 = scmp.ne.s32.totalorder %s75, %s76
      %p88 = scmp.eq.s32.totalorder %s24, 1
      %p89 = por %p87, %p88
      %p91 = scmp.ne.s32.totalorder %s76, %s90
      %p92 = scmp.eq.s32.totalorder %s24, 0
      %p93 = por %p91, %p92
      %s95 = sadd.s32 %s94, 1
      %p98 = scmp.eq.s32.totalorder %s18, 1
      %p99 = scmp.ne.s32.totalorder %s94, %s96
      %p100 = scmp.eq.s32.totalorder %s18, 0
      %p101 = por %p99, %p100
      %p102 = scmp.ne.s32.totalorder %s94, %s96
      %p103 = scmp.eq.s32.totalorder %s23, 1
      %p104 = por %p102, %p103
      %p105 = scmp.ne.s32.totalorder %s96, %s97
      %p106 = scmp.eq.s32.totalorder %s23, 0
      %p107 = por %p105, %p106
      %p108 = scmp.ne.s32.totalorder %s96, %s97
      %p109 = scmp.eq.s32.totalorder %s24, 1
      %p110 = por %p108, %p109
      %p112 = scmp.ne.s32.totalorder %s97, %s111
      %p113 = scmp.eq.s32.totalorder %s24, 0
      %p114 = por %p112, %p113
      %s116 = sadd.s32 %s115, 1
      %p119 = scmp.eq.s32.totalorder %s18, 1
      %p120 = scmp.ne.s32.totalorder %s115, %s117
      %p121 = scmp.eq.s32.totalorder %s18, 0
      %p122 = por %p120, %p121
      %p123 = scmp.ne.s32.totalorder %s115, %s117
      %p124 = scmp.eq.s32.totalorder %s23, 1
      %p125 = por %p123, %p124
      %p126 = scmp.ne.s32.totalorder %s117, %s118
      %p127 = scmp.eq.s32.totalorder %s23, 0
      %p128 = por %p126, %p127
      %p129 = scmp.ne.s32.totalorder %s117, %s118
      %p130 = scmp.eq.s32.totalorder %s24, 1
      %p131 = por %p129, %p130
      %p133 = scmp.ne.s32.totalorder %s118, %s132
      %p134 = scmp.eq.s32.totalorder %s24, 0
      %p135 = por %p133, %p134
      %s136 = ssub.s32 %s18, %s25
      %p137 = scmp.eq.s32.totalorder %s136, 0
      %s139 = sadd.s32 %s138, 1
      %s140 = scalar_select %p137, %s138, %s139
      %p143 = pneg %p137
      %p144 = scmp.eq.s32.totalorder %s18, 1
      %p145 = por %p143, %p144
      %p146 = scmp.ne.s32.totalorder %s138, %s141
      %p147 = scmp.eq.s32.totalorder %s18, 0
      %p148 = por %p146, %p147
      %p149 = scmp.ne.s32.totalorder %s138, %s141
      %p150 = scmp.eq.s32.totalorder %s23, 1
      %p151 = por %p149, %p150
      %p152 = scmp.ne.s32.totalorder %s141, %s142
      %p153 = scmp.eq.s32.totalorder %s23, 0
      %p154 = por %p152, %p153
      %p155 = scmp.ne.s32.totalorder %s141, %s142
      %p156 = scmp.eq.s32.totalorder %s24, 1
      %p157 = por %p155, %p156
      %p159 = scmp.ne.s32.totalorder %s142, %s158
      %p160 = scmp.eq.s32.totalorder %s24, 0
      %p161 = por %p159, %p160
      %p162 = scmp.le.s32.totalorder 1, %s18
      %p163 = scmp.lt.s32.totalorder %s18, 3
      %p164 = pnand %p162, %p163
      %p165 = pneg %p164
      // Predicated region
      $region9: #{tpu_custom_call.1} parent=5 // pred_check
        _
      $region10: #{tpu_custom_call.1} parent=5 // pred_check_branch
        %167 = sbr.rel (%p164) target = $region12
      $region11: #{tpu_custom_call.1} parent=5 // pred_region
        %s168 = ssub.s32 %s18, 1
        // Predicated region
        $region13: #{tpu_custom_call.1} parent=11 // pred_check
          %p169 = pneg %p65
        $region14: #{tpu_custom_call.1} parent=11 // pred_check_branch
          %171 = sbr.rel (%p169) target = $region16
        $region15: #{tpu_custom_call.1} parent=11 // pred_region
          %s173 = ssub.s32 768, 768
          %174 = vsyncadd [#allocation7], %s173
          %s175 = sshll.u32 [#allocation6], 4
          %s176 = int_to_ptr.vmem [resolvable:$true] %s175
          %181 = dma.hbm_to_vmem [thread:$0]  %s1, 768, %s176, [#allocation7], 128, 128, 8
        $region16: #{tpu_custom_call.1} parent=11 // pred_fallthru
          _
        // Predicated region
        $region17: #{tpu_custom_call.1} parent=11 // pred_check
          %p182 = pneg %p86
        $region18: #{tpu_custom_call.1} parent=11 // pred_check_branch
          %184 = sbr.rel (%p182) target = $region20
        $region19: #{tpu_custom_call.1} parent=11 // pred_region
          _
        $region20: #{tpu_custom_call.1} parent=11 // pred_fallthru
          _
        // Predicated region
        $region21: #{tpu_custom_call.1} parent=11 // pred_check
          %p185 = pneg %p107
        $region22: #{tpu_custom_call.1} parent=11 // pred_check_branch
          %187 = sbr.rel (%p185) target = $region24
        $region23: #{tpu_custom_call.1} parent=11 // pred_region
          %s189 = ssub.s32 768, 768
          %190 = vsyncadd [#allocation7], %s189
          %s191 = sshll.u32 [#allocation8], 4
          %s192 = int_to_ptr.vmem [resolvable:$true] %s191
          %197 = dma.hbm_to_vmem [thread:$0]  %s3, 768, %s192, [#allocation7], 128, 128, 8
        $region24: #{tpu_custom_call.1} parent=11 // pred_fallthru
          _
        // Predicated region
        $region25: #{tpu_custom_call.1} parent=11 // pred_check
          %p198 = pneg %p128
        $region26: #{tpu_custom_call.1} parent=11 // pred_check_branch
          %200 = sbr.rel (%p198) target = $region28
        $region27: #{tpu_custom_call.1} parent=11 // pred_region
          _
        $region28: #{tpu_custom_call.1} parent=11 // pred_fallthru
          _
      $region12: #{tpu_custom_call.1} parent=5 // pred_fallthru
        _
      %p201 = scmp.lt.s32.totalorder %s18, 2
      // Predicated region
      $region29: #{tpu_custom_call.1} parent=5 // pred_check
        %p202 = pneg %p201
      $region30: #{tpu_custom_call.1} parent=5 // pred_check_branch
        %204 = sbr.rel (%p202) target = $region32
      $region31: #{tpu_custom_call.1} parent=5 // pred_region
        // Predicated region
        $region33: #{tpu_custom_call.1} parent=31 // pred_check
          %p205 = pneg %p38
        $region34: #{tpu_custom_call.1} parent=31 // pred_check_branch
          %207 = sbr.rel (%p205) target = $region36
        $region35: #{tpu_custom_call.1} parent=31 // pred_region
          %s208 = sand.u32 %s28, 1
          %s209 = scalar_lea.sflag [#allocation4], %s208
          %s210 = sand.u32 %s28, 1
          %s211 = smul.addr %s210, 16
          %s212 = scalar_lea.vmem [#allocation3], %s211
          %s214 = ssub.s32 256, 256
          %215 = vsyncadd %s209, %s214
          %s216 = smul.addr %s18, 2
          %s217 = smul.addr %s216, 128
          %s218 = scalar_lea.hbm %s0, %s217
          %s219 = sshll.u32 %s212, 4
          %s220 = int_to_ptr.vmem [resolvable:$true] %s219
          %225 = dma.hbm_to_vmem [thread:$0]  %s218, 256, %s220, %s209, 128, 128, 8
        $region36: #{tpu_custom_call.1} parent=31 // pred_fallthru
          _
      $region32: #{tpu_custom_call.1} parent=5 // pred_fallthru
        _
      %p226 = scmp.le.s32.totalorder 1, %s18
      %p227 = scmp.lt.s32.totalorder %s18, 3
      %p228 = pnand %p226, %p227
      %p229 = pneg %p228
      // Predicated region
      $region37: #{tpu_custom_call.1} parent=5 // pred_check
        _
      $region38: #{tpu_custom_call.1} parent=5 // pred_check_branch
        %231 = sbr.rel (%p228) target = $region40
      $region39: #{tpu_custom_call.1} parent=5 // pred_region
        %s232 = ssub.s32 %s18, 1
        %s233 = sand.u32 %s31, 1
        %s234 = scalar_lea.sflag [#allocation4], %s233
        %s235 = sand.u32 %s31, 1
        %s236 = smul.addr %s235, 16
        %s237 = scalar_lea.vmem [#allocation3], %s236
        // Predicated region
        $region41: #{tpu_custom_call.1} parent=39 // pred_check
          %p238 = pneg %p44
        $region42: #{tpu_custom_call.1} parent=39 // pred_check_branch
          %240 = sbr.rel (%p238) target = $region44
        $region43: #{tpu_custom_call.1} parent=39 // pred_region
          %241 = dma.done %s234, 256
        $region44: #{tpu_custom_call.1} parent=39 // pred_fallthru
          _
        // Predicated region
        $region45: #{tpu_custom_call.1} parent=39 // pred_check
          %p242 = pneg %p65
        $region46: #{tpu_custom_call.1} parent=39 // pred_check_branch
          %244 = sbr.rel (%p242) target = $region48
        $region47: #{tpu_custom_call.1} parent=39 // pred_region
          %245 = dma.done [#allocation7], 768
        $region48: #{tpu_custom_call.1} parent=39 // pred_fallthru
          _
        // Predicated region
        $region49: #{tpu_custom_call.1} parent=39 // pred_check
          %p246 = pneg %p107
        $region50: #{tpu_custom_call.1} parent=39 // pred_check_branch
          %248 = sbr.rel (%p246) target = $region52
        $region51: #{tpu_custom_call.1} parent=39 // pred_region
          %249 = dma.done [#allocation7], 768
        $region52: #{tpu_custom_call.1} parent=39 // pred_fallthru
          _
        %s250 = sand.u32 %s31, 1
        %s251 = scalar_lea.sflag [#allocation4], %s250
        %s252 = sand.u32 %s31, 1
        %s253 = smul.addr %s252, 16
        %s254 = scalar_lea.vmem [#allocation3], %s253
        %p255 = pneg %p44
        %p256 = pneg %p41
        %p257 = pneg %p65
        %p258 = pneg %p62
        %p259 = pneg %p86
        %p260 = pneg %p83
        %p261 = pneg %p107
        %p262 = pneg %p104
        %p263 = pneg %p128
        %p264 = pneg %p125
        %p265 = pneg %p154
        %p266 = pneg %p151
        %s267 = sand.u32 %s141, 1
        %s268 = scalar_lea.sflag [#allocation5], %s267
        %s269 = sand.u32 %s141, 1
        %s270 = smul.addr %s269, 16
        %s271 = scalar_lea.vmem [#allocation9], %s270
        %vm272 = vcmask 647168
        %273 = vst.msk [vmem:[#allocation2] sm:$0x1] %vm272, 0.0
        %274 = vst.msk [vmem:[#allocation2 + $0x11] sm:$0x1] %vm272, 0.0
        %vm275 = vcmask 64512
        %276 = vst.msk [vmem:[#allocation2 + $0x1] sm:$0xff] %vm275, 0.0
        %277 = vst.msk [vmem:[#allocation2 + $0x9] sm:$0xff] %vm275, 0.0
        %vm278 = vcmask 654912
        %279 = vst.msk [vmem:[#allocation2 + $0x1] sm:$0xff] %vm278, 0.0
        %280 = vst.msk [vmem:[#allocation2 + $0x9] sm:$0xff] %vm278, 0.0
        %v281 = vld [vmem:[%s237] sm:$0xff]
        %v282 = vld [vmem:[%s237 + $0x8] sm:$0xff]
        %285 = vrot.lane.b32.xlu0 %v281, 8
        %v286 = vpop.permute.xlu0 %285
        %287 = vrot.lane.b32.xlu0 %v282, 8
        %v288 = vpop.permute.xlu0 %287
        %vm291 = vcmask 588864
        %292 = vst.msk [vmem:[#allocation2 + $0x1] sm:$0xff] %vm291, %v286
        %293 = vst.msk [vmem:[#allocation2 + $0x9] sm:$0xff] %vm291, %v288
        %v294 = vld [vmem:[#allocation2] sm:$0xff]
        %v295 = vld [vmem:[#allocation2 + $0x8] sm:$0xff]
        %v296 = vld [vmem:[#allocation6] sm:$0x1]
        %v297 = vlaneseq
        %v298 = vshrl.u32 %v297, 7
        %v299 = vsub.s32 0, %v298
        %v300 = vrot.slane %v296, %v299
        %302 = vrot.lane.b32.xlu0 %v300, 1
        %v303 = vpop.permute.xlu0 %302
        %v305 = vmul.f32 %v294, %v303
        %v306 = vmul.f32 %v295, %v303
        %v307 = vadd.f32 %v305, 0.0
        %v308 = vadd.f32 %v306, 0.0
        %v309 = vld [vmem:[#allocation6 + $0x1] sm:$0x1]
        %v310 = vlaneseq
        %v311 = vshrl.u32 %v310, 7
        %v312 = vsub.s32 0, %v311
        %v313 = vrot.slane %v309, %v312
        %315 = vrot.lane.b32.xlu0 %v313, 2
        %v316 = vpop.permute.xlu0 %315
        %v318 = vmul.f32 %v294, %v316
        %v319 = vmul.f32 %v295, %v316
        %322 = vrot.lane.b32.xlu0 %v318, 127
        %v323 = vpop.permute.xlu0 %322
        %324 = vrot.lane.b32.xlu0 %v319, 127
        %v325 = vpop.permute.xlu0 %324
        %v328 = vadd.f32 %v307, %v323
        %v329 = vadd.f32 %v308, %v325
        %v330 = vld [vmem:[#allocation6 + $0x2] sm:$0x1]
        %v331 = vlaneseq
        %v332 = vshrl.u32 %v331, 7
        %v333 = vsub.s32 0, %v332
        %v334 = vrot.slane %v330, %v333
        %336 = vrot.lane.b32.xlu0 %v334, 3
        %v337 = vpop.permute.xlu0 %336
        %v339 = vmul.f32 %v294, %v337
        %v340 = vmul.f32 %v295, %v337
        %343 = vrot.lane.b32.xlu0 %v339, 126
        %v344 = vpop.permute.xlu0 %343
        %345 = vrot.lane.b32.xlu0 %v340, 126
        %v346 = vpop.permute.xlu0 %345
        %v349 = vadd.f32 %v328, %v344
        %v350 = vadd.f32 %v329, %v346
        %v351 = vld [vmem:[#allocation6 + $0x3] sm:$0x1]
        %v352 = vlaneseq
        %v353 = vshrl.u32 %v352, 7
        %v354 = vsub.s32 0, %v353
        %v355 = vrot.slane %v351, %v354
        %357 = vrot.lane.b32.xlu0 %v355, 4
        %v358 = vpop.permute.xlu0 %357
        %v360 = vmul.f32 %v294, %v358
        %v361 = vmul.f32 %v295, %v358
        %364 = vrot.lane.b32.xlu0 %v360, 125
        %v365 = vpop.permute.xlu0 %364
        %366 = vrot.lane.b32.xlu0 %v361, 125
        %v367 = vpop.permute.xlu0 %366
        %v370 = vadd.f32 %v349, %v365
        %v371 = vadd.f32 %v350, %v367
        %v372 = vld [vmem:[#allocation6 + $0x4] sm:$0x1]
        %v373 = vlaneseq
        %v374 = vshrl.u32 %v373, 7
        %v375 = vsub.s32 0, %v374
        %v376 = vrot.slane %v372, %v375
        %378 = vrot.lane.b32.xlu0 %v376, 5
        %v379 = vpop.permute.xlu0 %378
        %v381 = vmul.f32 %v294, %v379
        %v382 = vmul.f32 %v295, %v379
        %385 = vrot.lane.b32.xlu0 %v381, 124
        %v386 = vpop.permute.xlu0 %385
        %387 = vrot.lane.b32.xlu0 %v382, 124
        %v388 = vpop.permute.xlu0 %387
        %v391 = vadd.f32 %v370, %v386
        %v392 = vadd.f32 %v371, %v388
        %v393 = vld [vmem:[#allocation6 + $0x5] sm:$0x1]
        %v394 = vlaneseq
        %v395 = vshrl.u32 %v394, 7
        %v396 = vsub.s32 0, %v395
        %v397 = vrot.slane %v393, %v396
        %399 = vrot.lane.b32.xlu0 %v397, 6
        %v400 = vpop.permute.xlu0 %399
        %v402 = vmul.f32 %v294, %v400
        %v403 = vmul.f32 %v295, %v400
        %406 = vrot.lane.b32.xlu0 %v402, 123
        %v407 = vpop.permute.xlu0 %406
        %408 = vrot.lane.b32.xlu0 %v403, 123
        %v409 = vpop.permute.xlu0 %408
        %v412 = vadd.f32 %v391, %v407
        %v413 = vadd.f32 %v392, %v409
        %v414 = vld [vmem:[#allocation6 + $0x6] sm:$0x1]
        %v415 = vlaneseq
        %v416 = vshrl.u32 %v415, 7
        %v417 = vsub.s32 0, %v416
        %v418 = vrot.slane %v414, %v417
        %420 = vrot.lane.b32.xlu0 %v418, 7
        %v421 = vpop.permute.xlu0 %420
        %v423 = vmul.f32 %v294, %v421
        %v424 = vmul.f32 %v295, %v421
        %427 = vrot.lane.b32.xlu0 %v423, 122
        %v428 = vpop.permute.xlu0 %427
        %429 = vrot.lane.b32.xlu0 %v424, 122
        %v430 = vpop.permute.xlu0 %429
        %v433 = vadd.f32 %v412, %v428
        %v434 = vadd.f32 %v413, %v430
        %v435 = vld [vmem:[#allocation6 + $0x7] sm:$0x1]
        %v436 = vlaneseq
        %v437 = vshrl.u32 %v436, 7
        %v438 = vsub.s32 0, %v437
        %v439 = vrot.slane %v435, %v438
        %441 = vrot.lane.b32.xlu0 %v439, 8
        %v442 = vpop.permute.xlu0 %441
        %v444 = vmul.f32 %v294, %v442
        %v445 = vmul.f32 %v295, %v442
        %448 = vrot.lane.b32.xlu0 %v444, 121
        %v449 = vpop.permute.xlu0 %448
        %450 = vrot.lane.b32.xlu0 %v445, 121
        %v451 = vpop.permute.xlu0 %450
        %v454 = vadd.f32 %v433, %v449
        %v455 = vadd.f32 %v434, %v451
        %v456 = vld [vmem:[#allocation6 + $0x8] sm:$0x1]
        %v457 = vlaneseq
        %v458 = vshrl.u32 %v457, 7
        %v459 = vsub.s32 0, %v458
        %v460 = vrot.slane %v456, %v459
        %462 = vrot.lane.b32.xlu0 %v460, 9
        %v463 = vpop.permute.xlu0 %462
        %v465 = vmul.f32 %v294, %v463
        %v466 = vmul.f32 %v295, %v463
        %469 = vrot.lane.b32.xlu0 %v465, 120
        %v470 = vpop.permute.xlu0 %469
        %471 = vrot.lane.b32.xlu0 %v466, 120
        %v472 = vpop.permute.xlu0 %471
        %v475 = vadd.f32 %v454, %v470
        %v476 = vadd.f32 %v455, %v472
        %v477 = vld [vmem:[#allocation6 + $0x9] sm:$0x1]
        %v478 = vlaneseq
        %v479 = vshrl.u32 %v478, 7
        %v480 = vsub.s32 0, %v479
        %v481 = vrot.slane %v477, %v480
        %483 = vrot.lane.b32.xlu0 %v481, 10
        %v484 = vpop.permute.xlu0 %483
        %v486 = vmul.f32 %v294, %v484
        %v487 = vmul.f32 %v295, %v484
        %490 = vrot.lane.b32.xlu0 %v486, 119
        %v491 = vpop.permute.xlu0 %490
        %492 = vrot.lane.b32.xlu0 %v487, 119
        %v493 = vpop.permute.xlu0 %492
        %v496 = vadd.f32 %v475, %v491
        %v497 = vadd.f32 %v476, %v493
        %v498 = vld [vmem:[#allocation6 + $0xa] sm:$0x1]
        %v499 = vlaneseq
        %v500 = vshrl.u32 %v499, 7
        %v501 = vsub.s32 0, %v500
        %v502 = vrot.slane %v498, %v501
        %504 = vrot.lane.b32.xlu0 %v502, 11
        %v505 = vpop.permute.xlu0 %504
        %v507 = vmul.f32 %v294, %v505
        %v508 = vmul.f32 %v295, %v505
        %511 = vrot.lane.b32.xlu0 %v507, 118
        %v512 = vpop.permute.xlu0 %511
        %513 = vrot.lane.b32.xlu0 %v508, 118
        %v514 = vpop.permute.xlu0 %513
        %v517 = vadd.f32 %v496, %v512
        %v518 = vadd.f32 %v497, %v514
        %v519 = vld [vmem:[#allocation6 + $0xb] sm:$0x1]
        %v520 = vlaneseq
        %v521 = vshrl.u32 %v520, 7
        %v522 = vsub.s32 0, %v521
        %v523 = vrot.slane %v519, %v522
        %525 = vrot.lane.b32.xlu0 %v523, 12
        %v526 = vpop.permute.xlu0 %525
        %v528 = vmul.f32 %v294, %v526
        %v529 = vmul.f32 %v295, %v526
        %532 = vrot.lane.b32.xlu0 %v528, 117
        %v533 = vpop.permute.xlu0 %532
        %534 = vrot.lane.b32.xlu0 %v529, 117
        %v535 = vpop.permute.xlu0 %534
        %v538 = vadd.f32 %v517, %v533
        %v539 = vadd.f32 %v518, %v535
        %v540 = vld [vmem:[#allocation6 + $0xc] sm:$0x1]
        %v541 = vlaneseq
        %v542 = vshrl.u32 %v541, 7
        %v543 = vsub.s32 0, %v542
        %v544 = vrot.slane %v540, %v543
        %546 = vrot.lane.b32.xlu0 %v544, 13
        %v547 = vpop.permute.xlu0 %546
        %v549 = vmul.f32 %v294, %v547
        %v550 = vmul.f32 %v295, %v547
        %553 = vrot.lane.b32.xlu0 %v549, 116
        %v554 = vpop.permute.xlu0 %553
        %555 = vrot.lane.b32.xlu0 %v550, 116
        %v556 = vpop.permute.xlu0 %555
        %v559 = vadd.f32 %v538, %v554
        %v560 = vadd.f32 %v539, %v556
        %v561 = vld [vmem:[#allocation6 + $0xd] sm:$0x1]
        %v562 = vlaneseq
        %v563 = vshrl.u32 %v562, 7
        %v564 = vsub.s32 0, %v563
        %v565 = vrot.slane %v561, %v564
        %567 = vrot.lane.b32.xlu0 %v565, 14
        %v568 = vpop.permute.xlu0 %567
        %v570 = vmul.f32 %v294, %v568
        %v571 = vmul.f32 %v295, %v568
        %574 = vrot.lane.b32.xlu0 %v570, 115
        %v575 = vpop.permute.xlu0 %574
        %576 = vrot.lane.b32.xlu0 %v571, 115
        %v577 = vpop.permute.xlu0 %576
        %v580 = vadd.f32 %v559, %v575
        %v581 = vadd.f32 %v560, %v577
        %v582 = vld [vmem:[#allocation6 + $0xe] sm:$0x1]
        %v583 = vlaneseq
        %v584 = vshrl.u32 %v583, 7
        %v585 = vsub.s32 0, %v584
        %v586 = vrot.slane %v582, %v585
        %588 = vrot.lane.b32.xlu0 %v586, 15
        %v589 = vpop.permute.xlu0 %588
        %v591 = vmul.f32 %v294, %v589
        %v592 = vmul.f32 %v295, %v589
        %595 = vrot.lane.b32.xlu0 %v591, 114
        %v596 = vpop.permute.xlu0 %595
        %597 = vrot.lane.b32.xlu0 %v592, 114
        %v598 = vpop.permute.xlu0 %597
        %v601 = vadd.f32 %v580, %v596
        %v602 = vadd.f32 %v581, %v598
        %v603 = vld [vmem:[#allocation2 + $0x1] sm:$0xff]
        %v604 = vld [vmem:[#allocation2 + $0x9] sm:$0xff]
        %v605 = vld [vmem:[#allocation6 + $0xf] sm:$0x1]
        %v606 = vlaneseq
        %v607 = vshrl.u32 %v606, 7
        %v608 = vsub.s32 0, %v607
        %v609 = vrot.slane %v605, %v608
        %611 = vrot.lane.b32.xlu0 %v609, 1
        %v612 = vpop.permute.xlu0 %611
        %v614 = vmul.f32 %v603, %v612
        %v615 = vmul.f32 %v604, %v612
        %v616 = vadd.f32 %v601, %v614
        %v617 = vadd.f32 %v602, %v615
        %v618 = vld [vmem:[#allocation6 + $0x10] sm:$0x1]
        %v619 = vlaneseq
        %v620 = vshrl.u32 %v619, 7
        %v621 = vsub.s32 0, %v620
        %v622 = vrot.slane %v618, %v621
        %624 = vrot.lane.b32.xlu0 %v622, 2
        %v625 = vpop.permute.xlu0 %624
        %v627 = vmul.f32 %v603, %v625
        %v628 = vmul.f32 %v604, %v625
        %631 = vrot.lane.b32.xlu0 %v627, 127
        %v632 = vpop.permute.xlu0 %631
        %633 = vrot.lane.b32.xlu0 %v628, 127
        %v634 = vpop.permute.xlu0 %633
        %v637 = vadd.f32 %v616, %v632
        %v638 = vadd.f32 %v617, %v634
        %v639 = vld [vmem:[#allocation6 + $0x11] sm:$0x1]
        %v640 = vlaneseq
        %v641 = vshrl.u32 %v640, 7
        %v642 = vsub.s32 0, %v641
        %v643 = vrot.slane %v639, %v642
        %645 = vrot.lane.b32.xlu0 %v643, 3
        %v646 = vpop.permute.xlu0 %645
        %v648 = vmul.f32 %v603, %v646
        %v649 = vmul.f32 %v604, %v646
        %652 = vrot.lane.b32.xlu0 %v648, 126
        %v653 = vpop.permute.xlu0 %652
        %654 = vrot.lane.b32.xlu0 %v649, 126
        %v655 = vpop.permute.xlu0 %654
        %v658 = vadd.f32 %v637, %v653
        %v659 = vadd.f32 %v638, %v655
        %v660 = vld [vmem:[#allocation6 + $0x12] sm:$0x1]
        %v661 = vlaneseq
        %v662 = vshrl.u32 %v661, 7
        %v663 = vsub.s32 0, %v662
        %v664 = vrot.slane %v660, %v663
        %666 = vrot.lane.b32.xlu0 %v664, 4
        %v667 = vpop.permute.xlu0 %666
        %v669 = vmul.f32 %v603, %v667
        %v670 = vmul.f32 %v604, %v667
        %673 = vrot.lane.b32.xlu0 %v669, 125
        %v674 = vpop.permute.xlu0 %673
        %675 = vrot.lane.b32.xlu0 %v670, 125
        %v676 = vpop.permute.xlu0 %675
        %v679 = vadd.f32 %v658, %v674
        %v680 = vadd.f32 %v659, %v676
        %v681 = vld [vmem:[#allocation6 + $0x13] sm:$0x1]
        %v682 = vlaneseq
        %v683 = vshrl.u32 %v682, 7
        %v684 = vsub.s32 0, %v683
        %v685 = vrot.slane %v681, %v684
        %687 = vrot.lane.b32.xlu0 %v685, 5
        %v688 = vpop.permute.xlu0 %687
        %v690 = vmul.f32 %v603, %v688
        %v691 = vmul.f32 %v604, %v688
        %694 = vrot.lane.b32.xlu0 %v690, 124
        %v695 = vpop.permute.xlu0 %694
        %696 = vrot.lane.b32.xlu0 %v691, 124
        %v697 = vpop.permute.xlu0 %696
        %v700 = vadd.f32 %v679, %v695
        %v701 = vadd.f32 %v680, %v697
        %v702 = vld [vmem:[#allocation6 + $0x14] sm:$0x1]
        %v703 = vlaneseq
        %v704 = vshrl.u32 %v703, 7
        %v705 = vsub.s32 0, %v704
        %v706 = vrot.slane %v702, %v705
        %708 = vrot.lane.b32.xlu0 %v706, 6
        %v709 = vpop.permute.xlu0 %708
        %v711 = vmul.f32 %v603, %v709
        %v712 = vmul.f32 %v604, %v709
        %715 = vrot.lane.b32.xlu0 %v711, 123
        %v716 = vpop.permute.xlu0 %715
        %717 = vrot.lane.b32.xlu0 %v712, 123
        %v718 = vpop.permute.xlu0 %717
        %v721 = vadd.f32 %v700, %v716
        %v722 = vadd.f32 %v701, %v718
        %v723 = vld [vmem:[#allocation6 + $0x15] sm:$0x1]
        %v724 = vlaneseq
        %v725 = vshrl.u32 %v724, 7
        %v726 = vsub.s32 0, %v725
        %v727 = vrot.slane %v723, %v726
        %729 = vrot.lane.b32.xlu0 %v727, 7
        %v730 = vpop.permute.xlu0 %729
        %v732 = vmul.f32 %v603, %v730
        %v733 = vmul.f32 %v604, %v730
        %736 = vrot.lane.b32.xlu0 %v732, 122
        %v737 = vpop.permute.xlu0 %736
        %738 = vrot.lane.b32.xlu0 %v733, 122
        %v739 = vpop.permute.xlu0 %738
        %v742 = vadd.f32 %v721, %v737
        %v743 = vadd.f32 %v722, %v739
        %v744 = vld [vmem:[#allocation6 + $0x16] sm:$0x1]
        %v745 = vlaneseq
        %v746 = vshrl.u32 %v745, 7
        %v747 = vsub.s32 0, %v746
        %v748 = vrot.slane %v744, %v747
        %750 = vrot.lane.b32.xlu0 %v748, 8
        %v751 = vpop.permute.xlu0 %750
        %v753 = vmul.f32 %v603, %v751
        %v754 = vmul.f32 %v604, %v751
        %757 = vrot.lane.b32.xlu0 %v753, 121
        %v758 = vpop.permute.xlu0 %757
        %759 = vrot.lane.b32.xlu0 %v754, 121
        %v760 = vpop.permute.xlu0 %759
        %v763 = vadd.f32 %v742, %v758
        %v764 = vadd.f32 %v743, %v760
        %v765 = vld [vmem:[#allocation6 + $0x17] sm:$0x1]
        %v766 = vlaneseq
        %v767 = vshrl.u32 %v766, 7
        %v768 = vsub.s32 0, %v767
        %v769 = vrot.slane %v765, %v768
        %771 = vrot.lane.b32.xlu0 %v769, 9
        %v772 = vpop.permute.xlu0 %771
        %v774 = vmul.f32 %v603, %v772
        %v775 = vmul.f32 %v604, %v772
        %778 = vrot.lane.b32.xlu0 %v774, 120
        %v779 = vpop.permute.xlu0 %778
        %780 = vrot.lane.b32.xlu0 %v775, 120
        %v781 = vpop.permute.xlu0 %780
        %v784 = vadd.f32 %v763, %v779
        %v785 = vadd.f32 %v764, %v781
        %v786 = vld [vmem:[#allocation6 + $0x18] sm:$0x1]
        %v787 = vlaneseq
        %v788 = vshrl.u32 %v787, 7
        %v789 = vsub.s32 0, %v788
        %v790 = vrot.slane %v786, %v789
        %792 = vrot.lane.b32.xlu0 %v790, 10
        %v793 = vpop.permute.xlu0 %792
        %v795 = vmul.f32 %v603, %v793
        %v796 = vmul.f32 %v604, %v793
        %799 = vrot.lane.b32.xlu0 %v795, 119
        %v800 = vpop.permute.xlu0 %799
        %801 = vrot.lane.b32.xlu0 %v796, 119
        %v802 = vpop.permute.xlu0 %801
        %v805 = vadd.f32 %v784, %v800
        %v806 = vadd.f32 %v785, %v802
        %v807 = vld [vmem:[#allocation6 + $0x19] sm:$0x1]
        %v808 = vlaneseq
        %v809 = vshrl.u32 %v808, 7
        %v810 = vsub.s32 0, %v809
        %v811 = vrot.slane %v807, %v810
        %813 = vrot.lane.b32.xlu0 %v811, 11
        %v814 = vpop.permute.xlu0 %813
        %v816 = vmul.f32 %v603, %v814
        %v817 = vmul.f32 %v604, %v814
        %820 = vrot.lane.b32.xlu0 %v816, 118
        %v821 = vpop.permute.xlu0 %820
        %822 = vrot.lane.b32.xlu0 %v817, 118
        %v823 = vpop.permute.xlu0 %822
        %v826 = vadd.f32 %v805, %v821
        %v827 = vadd.f32 %v806, %v823
        %v828 = vld [vmem:[#allocation6 + $0x1a] sm:$0x1]
        %v829 = vlaneseq
        %v830 = vshrl.u32 %v829, 7
        %v831 = vsub.s32 0, %v830
        %v832 = vrot.slane %v828, %v831
        %834 = vrot.lane.b32.xlu0 %v832, 12
        %v835 = vpop.permute.xlu0 %834
        %v837 = vmul.f32 %v603, %v835
        %v838 = vmul.f32 %v604, %v835
        %841 = vrot.lane.b32.xlu0 %v837, 117
        %v842 = vpop.permute.xlu0 %841
        %843 = vrot.lane.b32.xlu0 %v838, 117
        %v844 = vpop.permute.xlu0 %843
        %v847 = vadd.f32 %v826, %v842
        %v848 = vadd.f32 %v827, %v844
        %v849 = vld [vmem:[#allocation6 + $0x1b] sm:$0x1]
        %v850 = vlaneseq
        %v851 = vshrl.u32 %v850, 7
        %v852 = vsub.s32 0, %v851
        %v853 = vrot.slane %v849, %v852
        %855 = vrot.lane.b32.xlu0 %v853, 13
        %v856 = vpop.permute.xlu0 %855
        %v858 = vmul.f32 %v603, %v856
        %v859 = vmul.f32 %v604, %v856
        %862 = vrot.lane.b32.xlu0 %v858, 116
        %v863 = vpop.permute.xlu0 %862
        %864 = vrot.lane.b32.xlu0 %v859, 116
        %v865 = vpop.permute.xlu0 %864
        %v868 = vadd.f32 %v847, %v863
        %v869 = vadd.f32 %v848, %v865
        %v870 = vld [vmem:[#allocation6 + $0x1c] sm:$0x1]
        %v871 = vlaneseq
        %v872 = vshrl.u32 %v871, 7
        %v873 = vsub.s32 0, %v872
        %v874 = vrot.slane %v870, %v873
        %876 = vrot.lane.b32.xlu0 %v874, 14
        %v877 = vpop.permute.xlu0 %876
        %v879 = vmul.f32 %v603, %v877
        %v880 = vmul.f32 %v604, %v877
        %883 = vrot.lane.b32.xlu0 %v879, 115
        %v884 = vpop.permute.xlu0 %883
        %885 = vrot.lane.b32.xlu0 %v880, 115
        %v886 = vpop.permute.xlu0 %885
        %v889 = vadd.f32 %v868, %v884
        %v890 = vadd.f32 %v869, %v886
        %v891 = vld [vmem:[#allocation6 + $0x1d] sm:$0x1]
        %v892 = vlaneseq
        %v893 = vshrl.u32 %v892, 7
        %v894 = vsub.s32 0, %v893
        %v895 = vrot.slane %v891, %v894
        %897 = vrot.lane.b32.xlu0 %v895, 15
        %v898 = vpop.permute.xlu0 %897
        %v900 = vmul.f32 %v603, %v898
        %v901 = vmul.f32 %v604, %v898
        %904 = vrot.lane.b32.xlu0 %v900, 114
        %v905 = vpop.permute.xlu0 %904
        %906 = vrot.lane.b32.xlu0 %v901, 114
        %v907 = vpop.permute.xlu0 %906
        %v910 = vadd.f32 %v889, %v905
        %v911 = vadd.f32 %v890, %v907
        %v912 = vld [vmem:[#allocation2 + $0x2] sm:$0xff]
        %v913 = vld [vmem:[#allocation2 + $0xa] sm:$0xff]
        %v914 = vld [vmem:[#allocation6 + $0x1e] sm:$0x1]
        %v915 = vlaneseq
        %v916 = vshrl.u32 %v915, 7
        %v917 = vsub.s32 0, %v916
        %v918 = vrot.slane %v914, %v917
        %920 = vrot.lane.b32.xlu0 %v918, 1
        %v921 = vpop.permute.xlu0 %920
        %v923 = vmul.f32 %v912, %v921
        %v924 = vmul.f32 %v913, %v921
        %v925 = vadd.f32 %v910, %v923
        %v926 = vadd.f32 %v911, %v924
        %v927 = vld [vmem:[#allocation6 + $0x1f] sm:$0x1]
        %v928 = vlaneseq
        %v929 = vshrl.u32 %v928, 7
        %v930 = vsub.s32 0, %v929
        %v931 = vrot.slane %v927, %v930
        %933 = vrot.lane.b32.xlu0 %v931, 2
        %v934 = vpop.permute.xlu0 %933
        %v936 = vmul.f32 %v912, %v934
        %v937 = vmul.f32 %v913, %v934
        %940 = vrot.lane.b32.xlu0 %v936, 127
        %v941 = vpop.permute.xlu0 %940
        %942 = vrot.lane.b32.xlu0 %v937, 127
        %v943 = vpop.permute.xlu0 %942
        %v946 = vadd.f32 %v925, %v941
        %v947 = vadd.f32 %v926, %v943
        %v948 = vld [vmem:[#allocation6 + $0x20] sm:$0x1]
        %v949 = vlaneseq
        %v950 = vshrl.u32 %v949, 7
        %v951 = vsub.s32 0, %v950
        %v952 = vrot.slane %v948, %v951
        %954 = vrot.lane.b32.xlu0 %v952, 3
        %v955 = vpop.permute.xlu0 %954
        %v957 = vmul.f32 %v912, %v955
        %v958 = vmul.f32 %v913, %v955
        %961 = vrot.lane.b32.xlu0 %v957, 126
        %v962 = vpop.permute.xlu0 %961
        %963 = vrot.lane.b32.xlu0 %v958, 126
        %v964 = vpop.permute.xlu0 %963
        %v967 = vadd.f32 %v946, %v962
        %v968 = vadd.f32 %v947, %v964
        %v969 = vld [vmem:[#allocation6 + $0x21] sm:$0x1]
        %v970 = vlaneseq
        %v971 = vshrl.u32 %v970, 7
        %v972 = vsub.s32 0, %v971
        %v973 = vrot.slane %v969, %v972
        %975 = vrot.lane.b32.xlu0 %v973, 4
        %v976 = vpop.permute.xlu0 %975
        %v978 = vmul.f32 %v912, %v976
        %v979 = vmul.f32 %v913, %v976
        %982 = vrot.lane.b32.xlu0 %v978, 125
        %v983 = vpop.permute.xlu0 %982
        %984 = vrot.lane.b32.xlu0 %v979, 125
        %v985 = vpop.permute.xlu0 %984
        %v988 = vadd.f32 %v967, %v983
        %v989 = vadd.f32 %v968, %v985
        %v990 = vld [vmem:[#allocation6 + $0x22] sm:$0x1]
        %v991 = vlaneseq
        %v992 = vshrl.u32 %v991, 7
        %v993 = vsub.s32 0, %v992
        %v994 = vrot.slane %v990, %v993
        %996 = vrot.lane.b32.xlu0 %v994, 5
        %v997 = vpop.permute.xlu0 %996
        %v999 = vmul.f32 %v912, %v997
        %v1000 = vmul.f32 %v913, %v997
        %1003 = vrot.lane.b32.xlu0 %v999, 124
        %v1004 = vpop.permute.xlu0 %1003
        %1005 = vrot.lane.b32.xlu0 %v1000, 124
        %v1006 = vpop.permute.xlu0 %1005
        %v1009 = vadd.f32 %v988, %v1004
        %v1010 = vadd.f32 %v989, %v1006
        %v1011 = vld [vmem:[#allocation6 + $0x23] sm:$0x1]
        %v1012 = vlaneseq
        %v1013 = vshrl.u32 %v1012, 7
        %v1014 = vsub.s32 0, %v1013
        %v1015 = vrot.slane %v1011, %v1014
        %1017 = vrot.lane.b32.xlu0 %v1015, 6
        %v1018 = vpop.permute.xlu0 %1017
        %v1020 = vmul.f32 %v912, %v1018
        %v1021 = vmul.f32 %v913, %v1018
        %1024 = vrot.lane.b32.xlu0 %v1020, 123
        %v1025 = vpop.permute.xlu0 %1024
        %1026 = vrot.lane.b32.xlu0 %v1021, 123
        %v1027 = vpop.permute.xlu0 %1026
        %v1030 = vadd.f32 %v1009, %v1025
        %v1031 = vadd.f32 %v1010, %v1027
        %v1032 = vld [vmem:[#allocation6 + $0x24] sm:$0x1]
        %v1033 = vlaneseq
        %v1034 = vshrl.u32 %v1033, 7
        %v1035 = vsub.s32 0, %v1034
        %v1036 = vrot.slane %v1032, %v1035
        %1038 = vrot.lane.b32.xlu0 %v1036, 7
        %v1039 = vpop.permute.xlu0 %1038
        %v1041 = vmul.f32 %v912, %v1039
        %v1042 = vmul.f32 %v913, %v1039
        %1045 = vrot.lane.b32.xlu0 %v1041, 122
        %v1046 = vpop.permute.xlu0 %1045
        %1047 = vrot.lane.b32.xlu0 %v1042, 122
        %v1048 = vpop.permute.xlu0 %1047
        %v1051 = vadd.f32 %v1030, %v1046
        %v1052 = vadd.f32 %v1031, %v1048
        %v1053 = vld [vmem:[#allocation6 + $0x25] sm:$0x1]
        %v1054 = vlaneseq
        %v1055 = vshrl.u32 %v1054, 7
        %v1056 = vsub.s32 0, %v1055
        %v1057 = vrot.slane %v1053, %v1056
        %1059 = vrot.lane.b32.xlu0 %v1057, 8
        %v1060 = vpop.permute.xlu0 %1059
        %v1062 = vmul.f32 %v912, %v1060
        %v1063 = vmul.f32 %v913, %v1060
        %1066 = vrot.lane.b32.xlu0 %v1062, 121
        %v1067 = vpop.permute.xlu0 %1066
        %1068 = vrot.lane.b32.xlu0 %v1063, 121
        %v1069 = vpop.permute.xlu0 %1068
        %v1072 = vadd.f32 %v1051, %v1067
        %v1073 = vadd.f32 %v1052, %v1069
        %v1074 = vld [vmem:[#allocation6 + $0x26] sm:$0x1]
        %v1075 = vlaneseq
        %v1076 = vshrl.u32 %v1075, 7
        %v1077 = vsub.s32 0, %v1076
        %v1078 = vrot.slane %v1074, %v1077
        %1080 = vrot.lane.b32.xlu0 %v1078, 9
        %v1081 = vpop.permute.xlu0 %1080
        %v1083 = vmul.f32 %v912, %v1081
        %v1084 = vmul.f32 %v913, %v1081
        %1087 = vrot.lane.b32.xlu0 %v1083, 120
        %v1088 = vpop.permute.xlu0 %1087
        %1089 = vrot.lane.b32.xlu0 %v1084, 120
        %v1090 = vpop.permute.xlu0 %1089
        %v1093 = vadd.f32 %v1072, %v1088
        %v1094 = vadd.f32 %v1073, %v1090
        %v1095 = vld [vmem:[#allocation6 + $0x27] sm:$0x1]
        %v1096 = vlaneseq
        %v1097 = vshrl.u32 %v1096, 7
        %v1098 = vsub.s32 0, %v1097
        %v1099 = vrot.slane %v1095, %v1098
        %1101 = vrot.lane.b32.xlu0 %v1099, 10
        %v1102 = vpop.permute.xlu0 %1101
        %v1104 = vmul.f32 %v912, %v1102
        %v1105 = vmul.f32 %v913, %v1102
        %1108 = vrot.lane.b32.xlu0 %v1104, 119
        %v1109 = vpop.permute.xlu0 %1108
        %1110 = vrot.lane.b32.xlu0 %v1105, 119
        %v1111 = vpop.permute.xlu0 %1110
        %v1114 = vadd.f32 %v1093, %v1109
        %v1115 = vadd.f32 %v1094, %v1111
        %v1116 = vld [vmem:[#allocation6 + $0x28] sm:$0x1]
        %v1117 = vlaneseq
        %v1118 = vshrl.u32 %v1117, 7
        %v1119 = vsub.s32 0, %v1118
        %v1120 = vrot.slane %v1116, %v1119
        %1122 = vrot.lane.b32.xlu0 %v1120, 11
        %v1123 = vpop.permute.xlu0 %1122
        %v1125 = vmul.f32 %v912, %v1123
        %v1126 = vmul.f32 %v913, %v1123
        %1129 = vrot.lane.b32.xlu0 %v1125, 118
        %v1130 = vpop.permute.xlu0 %1129
        %1131 = vrot.lane.b32.xlu0 %v1126, 118
        %v1132 = vpop.permute.xlu0 %1131
        %v1135 = vadd.f32 %v1114, %v1130
        %v1136 = vadd.f32 %v1115, %v1132
        %v1137 = vld [vmem:[#allocation6 + $0x29] sm:$0x1]
        %v1138 = vlaneseq
        %v1139 = vshrl.u32 %v1138, 7
        %v1140 = vsub.s32 0, %v1139
        %v1141 = vrot.slane %v1137, %v1140
        %1143 = vrot.lane.b32.xlu0 %v1141, 12
        %v1144 = vpop.permute.xlu0 %1143
        %v1146 = vmul.f32 %v912, %v1144
        %v1147 = vmul.f32 %v913, %v1144
        %1150 = vrot.lane.b32.xlu0 %v1146, 117
        %v1151 = vpop.permute.xlu0 %1150
        %1152 = vrot.lane.b32.xlu0 %v1147, 117
        %v1153 = vpop.permute.xlu0 %1152
        %v1156 = vadd.f32 %v1135, %v1151
        %v1157 = vadd.f32 %v1136, %v1153
        %v1158 = vld [vmem:[#allocation6 + $0x2a] sm:$0x1]
        %v1159 = vlaneseq
        %v1160 = vshrl.u32 %v1159, 7
        %v1161 = vsub.s32 0, %v1160
        %v1162 = vrot.slane %v1158, %v1161
        %1164 = vrot.lane.b32.xlu0 %v1162, 13
        %v1165 = vpop.permute.xlu0 %1164
        %v1167 = vmul.f32 %v912, %v1165
        %v1168 = vmul.f32 %v913, %v1165
        %1171 = vrot.lane.b32.xlu0 %v1167, 116
        %v1172 = vpop.permute.xlu0 %1171
        %1173 = vrot.lane.b32.xlu0 %v1168, 116
        %v1174 = vpop.permute.xlu0 %1173
        %v1177 = vadd.f32 %v1156, %v1172
        %v1178 = vadd.f32 %v1157, %v1174
        %v1179 = vld [vmem:[#allocation6 + $0x2b] sm:$0x1]
        %v1180 = vlaneseq
        %v1181 = vshrl.u32 %v1180, 7
        %v1182 = vsub.s32 0, %v1181
        %v1183 = vrot.slane %v1179, %v1182
        %1185 = vrot.lane.b32.xlu0 %v1183, 14
        %v1186 = vpop.permute.xlu0 %1185
        %v1188 = vmul.f32 %v912, %v1186
        %v1189 = vmul.f32 %v913, %v1186
        %1192 = vrot.lane.b32.xlu0 %v1188, 115
        %v1193 = vpop.permute.xlu0 %1192
        %1194 = vrot.lane.b32.xlu0 %v1189, 115
        %v1195 = vpop.permute.xlu0 %1194
        %v1198 = vadd.f32 %v1177, %v1193
        %v1199 = vadd.f32 %v1178, %v1195
        %v1200 = vld [vmem:[#allocation6 + $0x2c] sm:$0x1]
        %v1201 = vlaneseq
        %v1202 = vshrl.u32 %v1201, 7
        %v1203 = vsub.s32 0, %v1202
        %v1204 = vrot.slane %v1200, %v1203
        %1206 = vrot.lane.b32.xlu0 %v1204, 15
        %v1207 = vpop.permute.xlu0 %1206
        %v1209 = vmul.f32 %v912, %v1207
        %v1210 = vmul.f32 %v913, %v1207
        %1213 = vrot.lane.b32.xlu0 %v1209, 114
        %v1214 = vpop.permute.xlu0 %1213
        %1215 = vrot.lane.b32.xlu0 %v1210, 114
        %v1216 = vpop.permute.xlu0 %1215
        %v1219 = vadd.f32 %v1198, %v1214
        %v1220 = vadd.f32 %v1199, %v1216
        %v1221 = vld [vmem:[%s2] sm:$0x1]
        %v1223 = vlaneseq
        %v1224 = vshrl.u32 %v1223, 7
        %v1225 = vsub.s32 0, %v1224
        %v1226 = vrot.slane %v1221, %v1225
        %1227 = vrot.lane.b32.xlu0 %v1226, 1
        %v1228 = vpop.permute.xlu0 %1227
        %v1230 = vadd.f32 %v1219, %v1228
        %v1231 = vadd.f32 %v1220, %v1228
        %v1232 = vmax.f32 %v1230, 0.0
        %v1233 = vmax.f32 %v1231, 0.0
        %1236 = vrot.lane.b32.xlu0 %v1232, 7
        %v1237 = vpop.permute.xlu0 %1236
        %1238 = vrot.lane.b32.xlu0 %v1233, 7
        %v1239 = vpop.permute.xlu0 %1238
        %1242 = vst.msk [vmem:[#allocation2 + $0x1] sm:$0xff] %vm291, %v1237
        %1243 = vst.msk [vmem:[#allocation2 + $0x9] sm:$0xff] %vm291, %v1239
        %v1244 = vld [vmem:[#allocation2] sm:$0xff]
        %v1245 = vld [vmem:[#allocation2 + $0x8] sm:$0xff]
        %v1246 = vld [vmem:[#allocation8] sm:$0x1]
        %v1247 = vlaneseq
        %v1248 = vshrl.u32 %v1247, 7
        %v1249 = vsub.s32 0, %v1248
        %v1250 = vrot.slane %v1246, %v1249
        %1252 = vrot.lane.b32.xlu0 %v1250, 1
        %v1253 = vpop.permute.xlu0 %1252
        %v1255 = vmul.f32 %v1244, %v1253
        %v1256 = vmul.f32 %v1245, %v1253
        %v1257 = vadd.f32 %v1255, 0.0
        %v1258 = vadd.f32 %v1256, 0.0
        %v1259 = vld [vmem:[#allocation8 + $0x1] sm:$0x1]
        %v1260 = vlaneseq
        %v1261 = vshrl.u32 %v1260, 7
        %v1262 = vsub.s32 0, %v1261
        %v1263 = vrot.slane %v1259, %v1262
        %1265 = vrot.lane.b32.xlu0 %v1263, 2
        %v1266 = vpop.permute.xlu0 %1265
        %v1268 = vmul.f32 %v1244, %v1266
        %v1269 = vmul.f32 %v1245, %v1266
        %1272 = vrot.lane.b32.xlu0 %v1268, 127
        %v1273 = vpop.permute.xlu0 %1272
        %1274 = vrot.lane.b32.xlu0 %v1269, 127
        %v1275 = vpop.permute.xlu0 %1274
        %v1278 = vadd.f32 %v1257, %v1273
        %v1279 = vadd.f32 %v1258, %v1275
        %v1280 = vld [vmem:[#allocation8 + $0x2] sm:$0x1]
        %v1281 = vlaneseq
        %v1282 = vshrl.u32 %v1281, 7
        %v1283 = vsub.s32 0, %v1282
        %v1284 = vrot.slane %v1280, %v1283
        %1286 = vrot.lane.b32.xlu0 %v1284, 3
        %v1287 = vpop.permute.xlu0 %1286
        %v1289 = vmul.f32 %v1244, %v1287
        %v1290 = vmul.f32 %v1245, %v1287
        %1293 = vrot.lane.b32.xlu0 %v1289, 126
        %v1294 = vpop.permute.xlu0 %1293
        %1295 = vrot.lane.b32.xlu0 %v1290, 126
        %v1296 = vpop.permute.xlu0 %1295
        %v1299 = vadd.f32 %v1278, %v1294
        %v1300 = vadd.f32 %v1279, %v1296
        %v1301 = vld [vmem:[#allocation8 + $0x3] sm:$0x1]
        %v1302 = vlaneseq
        %v1303 = vshrl.u32 %v1302, 7
        %v1304 = vsub.s32 0, %v1303
        %v1305 = vrot.slane %v1301, %v1304
        %1307 = vrot.lane.b32.xlu0 %v1305, 4
        %v1308 = vpop.permute.xlu0 %1307
        %v1310 = vmul.f32 %v1244, %v1308
        %v1311 = vmul.f32 %v1245, %v1308
        %1314 = vrot.lane.b32.xlu0 %v1310, 125
        %v1315 = vpop.permute.xlu0 %1314
        %1316 = vrot.lane.b32.xlu0 %v1311, 125
        %v1317 = vpop.permute.xlu0 %1316
        %v1320 = vadd.f32 %v1299, %v1315
        %v1321 = vadd.f32 %v1300, %v1317
        %v1322 = vld [vmem:[#allocation8 + $0x4] sm:$0x1]
        %v1323 = vlaneseq
        %v1324 = vshrl.u32 %v1323, 7
        %v1325 = vsub.s32 0, %v1324
        %v1326 = vrot.slane %v1322, %v1325
        %1328 = vrot.lane.b32.xlu0 %v1326, 5
        %v1329 = vpop.permute.xlu0 %1328
        %v1331 = vmul.f32 %v1244, %v1329
        %v1332 = vmul.f32 %v1245, %v1329
        %1335 = vrot.lane.b32.xlu0 %v1331, 124
        %v1336 = vpop.permute.xlu0 %1335
        %1337 = vrot.lane.b32.xlu0 %v1332, 124
        %v1338 = vpop.permute.xlu0 %1337
        %v1341 = vadd.f32 %v1320, %v1336
        %v1342 = vadd.f32 %v1321, %v1338
        %v1343 = vld [vmem:[#allocation8 + $0x5] sm:$0x1]
        %v1344 = vlaneseq
        %v1345 = vshrl.u32 %v1344, 7
        %v1346 = vsub.s32 0, %v1345
        %v1347 = vrot.slane %v1343, %v1346
        %1349 = vrot.lane.b32.xlu0 %v1347, 6
        %v1350 = vpop.permute.xlu0 %1349
        %v1352 = vmul.f32 %v1244, %v1350
        %v1353 = vmul.f32 %v1245, %v1350
        %1356 = vrot.lane.b32.xlu0 %v1352, 123
        %v1357 = vpop.permute.xlu0 %1356
        %1358 = vrot.lane.b32.xlu0 %v1353, 123
        %v1359 = vpop.permute.xlu0 %1358
        %v1362 = vadd.f32 %v1341, %v1357
        %v1363 = vadd.f32 %v1342, %v1359
        %v1364 = vld [vmem:[#allocation8 + $0x6] sm:$0x1]
        %v1365 = vlaneseq
        %v1366 = vshrl.u32 %v1365, 7
        %v1367 = vsub.s32 0, %v1366
        %v1368 = vrot.slane %v1364, %v1367
        %1370 = vrot.lane.b32.xlu0 %v1368, 7
        %v1371 = vpop.permute.xlu0 %1370
        %v1373 = vmul.f32 %v1244, %v1371
        %v1374 = vmul.f32 %v1245, %v1371
        %1377 = vrot.lane.b32.xlu0 %v1373, 122
        %v1378 = vpop.permute.xlu0 %1377
        %1379 = vrot.lane.b32.xlu0 %v1374, 122
        %v1380 = vpop.permute.xlu0 %1379
        %v1383 = vadd.f32 %v1362, %v1378
        %v1384 = vadd.f32 %v1363, %v1380
        %v1385 = vld [vmem:[#allocation8 + $0x7] sm:$0x1]
        %v1386 = vlaneseq
        %v1387 = vshrl.u32 %v1386, 7
        %v1388 = vsub.s32 0, %v1387
        %v1389 = vrot.slane %v1385, %v1388
        %1391 = vrot.lane.b32.xlu0 %v1389, 8
        %v1392 = vpop.permute.xlu0 %1391
        %v1394 = vmul.f32 %v1244, %v1392
        %v1395 = vmul.f32 %v1245, %v1392
        %1398 = vrot.lane.b32.xlu0 %v1394, 121
        %v1399 = vpop.permute.xlu0 %1398
        %1400 = vrot.lane.b32.xlu0 %v1395, 121
        %v1401 = vpop.permute.xlu0 %1400
        %v1404 = vadd.f32 %v1383, %v1399
        %v1405 = vadd.f32 %v1384, %v1401
        %v1406 = vld [vmem:[#allocation8 + $0x8] sm:$0x1]
        %v1407 = vlaneseq
        %v1408 = vshrl.u32 %v1407, 7
        %v1409 = vsub.s32 0, %v1408
        %v1410 = vrot.slane %v1406, %v1409
        %1412 = vrot.lane.b32.xlu0 %v1410, 9
        %v1413 = vpop.permute.xlu0 %1412
        %v1415 = vmul.f32 %v1244, %v1413
        %v1416 = vmul.f32 %v1245, %v1413
        %1419 = vrot.lane.b32.xlu0 %v1415, 120
        %v1420 = vpop.permute.xlu0 %1419
        %1421 = vrot.lane.b32.xlu0 %v1416, 120
        %v1422 = vpop.permute.xlu0 %1421
        %v1425 = vadd.f32 %v1404, %v1420
        %v1426 = vadd.f32 %v1405, %v1422
        %v1427 = vld [vmem:[#allocation8 + $0x9] sm:$0x1]
        %v1428 = vlaneseq
        %v1429 = vshrl.u32 %v1428, 7
        %v1430 = vsub.s32 0, %v1429
        %v1431 = vrot.slane %v1427, %v1430
        %1433 = vrot.lane.b32.xlu0 %v1431, 10
        %v1434 = vpop.permute.xlu0 %1433
        %v1436 = vmul.f32 %v1244, %v1434
        %v1437 = vmul.f32 %v1245, %v1434
        %1440 = vrot.lane.b32.xlu0 %v1436, 119
        %v1441 = vpop.permute.xlu0 %1440
        %1442 = vrot.lane.b32.xlu0 %v1437, 119
        %v1443 = vpop.permute.xlu0 %1442
        %v1446 = vadd.f32 %v1425, %v1441
        %v1447 = vadd.f32 %v1426, %v1443
        %v1448 = vld [vmem:[#allocation8 + $0xa] sm:$0x1]
        %v1449 = vlaneseq
        %v1450 = vshrl.u32 %v1449, 7
        %v1451 = vsub.s32 0, %v1450
        %v1452 = vrot.slane %v1448, %v1451
        %1454 = vrot.lane.b32.xlu0 %v1452, 11
        %v1455 = vpop.permute.xlu0 %1454
        %v1457 = vmul.f32 %v1244, %v1455
        %v1458 = vmul.f32 %v1245, %v1455
        %1461 = vrot.lane.b32.xlu0 %v1457, 118
        %v1462 = vpop.permute.xlu0 %1461
        %1463 = vrot.lane.b32.xlu0 %v1458, 118
        %v1464 = vpop.permute.xlu0 %1463
        %v1467 = vadd.f32 %v1446, %v1462
        %v1468 = vadd.f32 %v1447, %v1464
        %v1469 = vld [vmem:[#allocation8 + $0xb] sm:$0x1]
        %v1470 = vlaneseq
        %v1471 = vshrl.u32 %v1470, 7
        %v1472 = vsub.s32 0, %v1471
        %v1473 = vrot.slane %v1469, %v1472
        %1475 = vrot.lane.b32.xlu0 %v1473, 12
        %v1476 = vpop.permute.xlu0 %1475
        %v1478 = vmul.f32 %v1244, %v1476
        %v1479 = vmul.f32 %v1245, %v1476
        %1482 = vrot.lane.b32.xlu0 %v1478, 117
        %v1483 = vpop.permute.xlu0 %1482
        %1484 = vrot.lane.b32.xlu0 %v1479, 117
        %v1485 = vpop.permute.xlu0 %1484
        %v1488 = vadd.f32 %v1467, %v1483
        %v1489 = vadd.f32 %v1468, %v1485
        %v1490 = vld [vmem:[#allocation8 + $0xc] sm:$0x1]
        %v1491 = vlaneseq
        %v1492 = vshrl.u32 %v1491, 7
        %v1493 = vsub.s32 0, %v1492
        %v1494 = vrot.slane %v1490, %v1493
        %1496 = vrot.lane.b32.xlu0 %v1494, 13
        %v1497 = vpop.permute.xlu0 %1496
        %v1499 = vmul.f32 %v1244, %v1497
        %v1500 = vmul.f32 %v1245, %v1497
        %1503 = vrot.lane.b32.xlu0 %v1499, 116
        %v1504 = vpop.permute.xlu0 %1503
        %1505 = vrot.lane.b32.xlu0 %v1500, 116
        %v1506 = vpop.permute.xlu0 %1505
        %v1509 = vadd.f32 %v1488, %v1504
        %v1510 = vadd.f32 %v1489, %v1506
        %v1511 = vld [vmem:[#allocation8 + $0xd] sm:$0x1]
        %v1512 = vlaneseq
        %v1513 = vshrl.u32 %v1512, 7
        %v1514 = vsub.s32 0, %v1513
        %v1515 = vrot.slane %v1511, %v1514
        %1517 = vrot.lane.b32.xlu0 %v1515, 14
        %v1518 = vpop.permute.xlu0 %1517
        %v1520 = vmul.f32 %v1244, %v1518
        %v1521 = vmul.f32 %v1245, %v1518
        %1524 = vrot.lane.b32.xlu0 %v1520, 115
        %v1525 = vpop.permute.xlu0 %1524
        %1526 = vrot.lane.b32.xlu0 %v1521, 115
        %v1527 = vpop.permute.xlu0 %1526
        %v1530 = vadd.f32 %v1509, %v1525
        %v1531 = vadd.f32 %v1510, %v1527
        %v1532 = vld [vmem:[#allocation8 + $0xe] sm:$0x1]
        %v1533 = vlaneseq
        %v1534 = vshrl.u32 %v1533, 7
        %v1535 = vsub.s32 0, %v1534
        %v1536 = vrot.slane %v1532, %v1535
        %1538 = vrot.lane.b32.xlu0 %v1536, 15
        %v1539 = vpop.permute.xlu0 %1538
        %v1541 = vmul.f32 %v1244, %v1539
        %v1542 = vmul.f32 %v1245, %v1539
        %1545 = vrot.lane.b32.xlu0 %v1541, 114
        %v1546 = vpop.permute.xlu0 %1545
        %1547 = vrot.lane.b32.xlu0 %v1542, 114
        %v1548 = vpop.permute.xlu0 %1547
        %v1551 = vadd.f32 %v1530, %v1546
        %v1552 = vadd.f32 %v1531, %v1548
        %v1553 = vld [vmem:[#allocation2 + $0x1] sm:$0xff]
        %v1554 = vld [vmem:[#allocation2 + $0x9] sm:$0xff]
        %v1555 = vld [vmem:[#allocation8 + $0xf] sm:$0x1]
        %v1556 = vlaneseq
        %v1557 = vshrl.u32 %v1556, 7
        %v1558 = vsub.s32 0, %v1557
        %v1559 = vrot.slane %v1555, %v1558
        %1561 = vrot.lane.b32.xlu0 %v1559, 1
        %v1562 = vpop.permute.xlu0 %1561
        %v1564 = vmul.f32 %v1553, %v1562
        %v1565 = vmul.f32 %v1554, %v1562
        %v1566 = vadd.f32 %v1551, %v1564
        %v1567 = vadd.f32 %v1552, %v1565
        %v1568 = vld [vmem:[#allocation8 + $0x10] sm:$0x1]
        %v1569 = vlaneseq
        %v1570 = vshrl.u32 %v1569, 7
        %v1571 = vsub.s32 0, %v1570
        %v1572 = vrot.slane %v1568, %v1571
        %1574 = vrot.lane.b32.xlu0 %v1572, 2
        %v1575 = vpop.permute.xlu0 %1574
        %v1577 = vmul.f32 %v1553, %v1575
        %v1578 = vmul.f32 %v1554, %v1575
        %1581 = vrot.lane.b32.xlu0 %v1577, 127
        %v1582 = vpop.permute.xlu0 %1581
        %1583 = vrot.lane.b32.xlu0 %v1578, 127
        %v1584 = vpop.permute.xlu0 %1583
        %v1587 = vadd.f32 %v1566, %v1582
        %v1588 = vadd.f32 %v1567, %v1584
        %v1589 = vld [vmem:[#allocation8 + $0x11] sm:$0x1]
        %v1590 = vlaneseq
        %v1591 = vshrl.u32 %v1590, 7
        %v1592 = vsub.s32 0, %v1591
        %v1593 = vrot.slane %v1589, %v1592
        %1595 = vrot.lane.b32.xlu0 %v1593, 3
        %v1596 = vpop.permute.xlu0 %1595
        %v1598 = vmul.f32 %v1553, %v1596
        %v1599 = vmul.f32 %v1554, %v1596
        %1602 = vrot.lane.b32.xlu0 %v1598, 126
        %v1603 = vpop.permute.xlu0 %1602
        %1604 = vrot.lane.b32.xlu0 %v1599, 126
        %v1605 = vpop.permute.xlu0 %1604
        %v1608 = vadd.f32 %v1587, %v1603
        %v1609 = vadd.f32 %v1588, %v1605
        %v1610 = vld [vmem:[#allocation8 + $0x12] sm:$0x1]
        %v1611 = vlaneseq
        %v1612 = vshrl.u32 %v1611, 7
        %v1613 = vsub.s32 0, %v1612
        %v1614 = vrot.slane %v1610, %v1613
        %1616 = vrot.lane.b32.xlu0 %v1614, 4
        %v1617 = vpop.permute.xlu0 %1616
        %v1619 = vmul.f32 %v1553, %v1617
        %v1620 = vmul.f32 %v1554, %v1617
        %1623 = vrot.lane.b32.xlu0 %v1619, 125
        %v1624 = vpop.permute.xlu0 %1623
        %1625 = vrot.lane.b32.xlu0 %v1620, 125
        %v1626 = vpop.permute.xlu0 %1625
        %v1629 = vadd.f32 %v1608, %v1624
        %v1630 = vadd.f32 %v1609, %v1626
        %v1631 = vld [vmem:[#allocation8 + $0x13] sm:$0x1]
        %v1632 = vlaneseq
        %v1633 = vshrl.u32 %v1632, 7
        %v1634 = vsub.s32 0, %v1633
        %v1635 = vrot.slane %v1631, %v1634
        %1637 = vrot.lane.b32.xlu0 %v1635, 5
        %v1638 = vpop.permute.xlu0 %1637
        %v1640 = vmul.f32 %v1553, %v1638
        %v1641 = vmul.f32 %v1554, %v1638
        %1644 = vrot.lane.b32.xlu0 %v1640, 124
        %v1645 = vpop.permute.xlu0 %1644
        %1646 = vrot.lane.b32.xlu0 %v1641, 124
        %v1647 = vpop.permute.xlu0 %1646
        %v1650 = vadd.f32 %v1629, %v1645
        %v1651 = vadd.f32 %v1630, %v1647
        %v1652 = vld [vmem:[#allocation8 + $0x14] sm:$0x1]
        %v1653 = vlaneseq
        %v1654 = vshrl.u32 %v1653, 7
        %v1655 = vsub.s32 0, %v1654
        %v1656 = vrot.slane %v1652, %v1655
        %1658 = vrot.lane.b32.xlu0 %v1656, 6
        %v1659 = vpop.permute.xlu0 %1658
        %v1661 = vmul.f32 %v1553, %v1659
        %v1662 = vmul.f32 %v1554, %v1659
        %1665 = vrot.lane.b32.xlu0 %v1661, 123
        %v1666 = vpop.permute.xlu0 %1665
        %1667 = vrot.lane.b32.xlu0 %v1662, 123
        %v1668 = vpop.permute.xlu0 %1667
        %v1671 = vadd.f32 %v1650, %v1666
        %v1672 = vadd.f32 %v1651, %v1668
        %v1673 = vld [vmem:[#allocation8 + $0x15] sm:$0x1]
        %v1674 = vlaneseq
        %v1675 = vshrl.u32 %v1674, 7
        %v1676 = vsub.s32 0, %v1675
        %v1677 = vrot.slane %v1673, %v1676
        %1679 = vrot.lane.b32.xlu0 %v1677, 7
        %v1680 = vpop.permute.xlu0 %1679
        %v1682 = vmul.f32 %v1553, %v1680
        %v1683 = vmul.f32 %v1554, %v1680
        %1686 = vrot.lane.b32.xlu0 %v1682, 122
        %v1687 = vpop.permute.xlu0 %1686
        %1688 = vrot.lane.b32.xlu0 %v1683, 122
        %v1689 = vpop.permute.xlu0 %1688
        %v1692 = vadd.f32 %v1671, %v1687
        %v1693 = vadd.f32 %v1672, %v1689
        %v1694 = vld [vmem:[#allocation8 + $0x16] sm:$0x1]
        %v1695 = vlaneseq
        %v1696 = vshrl.u32 %v1695, 7
        %v1697 = vsub.s32 0, %v1696
        %v1698 = vrot.slane %v1694, %v1697
        %1700 = vrot.lane.b32.xlu0 %v1698, 8
        %v1701 = vpop.permute.xlu0 %1700
        %v1703 = vmul.f32 %v1553, %v1701
        %v1704 = vmul.f32 %v1554, %v1701
        %1707 = vrot.lane.b32.xlu0 %v1703, 121
        %v1708 = vpop.permute.xlu0 %1707
        %1709 = vrot.lane.b32.xlu0 %v1704, 121
        %v1710 = vpop.permute.xlu0 %1709
        %v1713 = vadd.f32 %v1692, %v1708
        %v1714 = vadd.f32 %v1693, %v1710
        %v1715 = vld [vmem:[#allocation8 + $0x17] sm:$0x1]
        %v1716 = vlaneseq
        %v1717 = vshrl.u32 %v1716, 7
        %v1718 = vsub.s32 0, %v1717
        %v1719 = vrot.slane %v1715, %v1718
        %1721 = vrot.lane.b32.xlu0 %v1719, 9
        %v1722 = vpop.permute.xlu0 %1721
        %v1724 = vmul.f32 %v1553, %v1722
        %v1725 = vmul.f32 %v1554, %v1722
        %1728 = vrot.lane.b32.xlu0 %v1724, 120
        %v1729 = vpop.permute.xlu0 %1728
        %1730 = vrot.lane.b32.xlu0 %v1725, 120
        %v1731 = vpop.permute.xlu0 %1730
        %v1734 = vadd.f32 %v1713, %v1729
        %v1735 = vadd.f32 %v1714, %v1731
        %v1736 = vld [vmem:[#allocation8 + $0x18] sm:$0x1]
        %v1737 = vlaneseq
        %v1738 = vshrl.u32 %v1737, 7
        %v1739 = vsub.s32 0, %v1738
        %v1740 = vrot.slane %v1736, %v1739
        %1742 = vrot.lane.b32.xlu0 %v1740, 10
        %v1743 = vpop.permute.xlu0 %1742
        %v1745 = vmul.f32 %v1553, %v1743
        %v1746 = vmul.f32 %v1554, %v1743
        %1749 = vrot.lane.b32.xlu0 %v1745, 119
        %v1750 = vpop.permute.xlu0 %1749
        %1751 = vrot.lane.b32.xlu0 %v1746, 119
        %v1752 = vpop.permute.xlu0 %1751
        %v1755 = vadd.f32 %v1734, %v1750
        %v1756 = vadd.f32 %v1735, %v1752
        %v1757 = vld [vmem:[#allocation8 + $0x19] sm:$0x1]
        %v1758 = vlaneseq
        %v1759 = vshrl.u32 %v1758, 7
        %v1760 = vsub.s32 0, %v1759
        %v1761 = vrot.slane %v1757, %v1760
        %1763 = vrot.lane.b32.xlu0 %v1761, 11
        %v1764 = vpop.permute.xlu0 %1763
        %v1766 = vmul.f32 %v1553, %v1764
        %v1767 = vmul.f32 %v1554, %v1764
        %1770 = vrot.lane.b32.xlu0 %v1766, 118
        %v1771 = vpop.permute.xlu0 %1770
        %1772 = vrot.lane.b32.xlu0 %v1767, 118
        %v1773 = vpop.permute.xlu0 %1772
        %v1776 = vadd.f32 %v1755, %v1771
        %v1777 = vadd.f32 %v1756, %v1773
        %v1778 = vld [vmem:[#allocation8 + $0x1a] sm:$0x1]
        %v1779 = vlaneseq
        %v1780 = vshrl.u32 %v1779, 7
        %v1781 = vsub.s32 0, %v1780
        %v1782 = vrot.slane %v1778, %v1781
        %1784 = vrot.lane.b32.xlu0 %v1782, 12
        %v1785 = vpop.permute.xlu0 %1784
        %v1787 = vmul.f32 %v1553, %v1785
        %v1788 = vmul.f32 %v1554, %v1785
        %1791 = vrot.lane.b32.xlu0 %v1787, 117
        %v1792 = vpop.permute.xlu0 %1791
        %1793 = vrot.lane.b32.xlu0 %v1788, 117
        %v1794 = vpop.permute.xlu0 %1793
        %v1797 = vadd.f32 %v1776, %v1792
        %v1798 = vadd.f32 %v1777, %v1794
        %v1799 = vld [vmem:[#allocation8 + $0x1b] sm:$0x1]
        %v1800 = vlaneseq
        %v1801 = vshrl.u32 %v1800, 7
        %v1802 = vsub.s32 0, %v1801
        %v1803 = vrot.slane %v1799, %v1802
        %1805 = vrot.lane.b32.xlu0 %v1803, 13
        %v1806 = vpop.permute.xlu0 %1805
        %v1808 = vmul.f32 %v1553, %v1806
        %v1809 = vmul.f32 %v1554, %v1806
        %1812 = vrot.lane.b32.xlu0 %v1808, 116
        %v1813 = vpop.permute.xlu0 %1812
        %1814 = vrot.lane.b32.xlu0 %v1809, 116
        %v1815 = vpop.permute.xlu0 %1814
        %v1818 = vadd.f32 %v1797, %v1813
        %v1819 = vadd.f32 %v1798, %v1815
        %v1820 = vld [vmem:[#allocation8 + $0x1c] sm:$0x1]
        %v1821 = vlaneseq
        %v1822 = vshrl.u32 %v1821, 7
        %v1823 = vsub.s32 0, %v1822
        %v1824 = vrot.slane %v1820, %v1823
        %1826 = vrot.lane.b32.xlu0 %v1824, 14
        %v1827 = vpop.permute.xlu0 %1826
        %v1829 = vmul.f32 %v1553, %v1827
        %v1830 = vmul.f32 %v1554, %v1827
        %1833 = vrot.lane.b32.xlu0 %v1829, 115
        %v1834 = vpop.permute.xlu0 %1833
        %1835 = vrot.lane.b32.xlu0 %v1830, 115
        %v1836 = vpop.permute.xlu0 %1835
        %v1839 = vadd.f32 %v1818, %v1834
        %v1840 = vadd.f32 %v1819, %v1836
        %v1841 = vld [vmem:[#allocation8 + $0x1d] sm:$0x1]
        %v1842 = vlaneseq
        %v1843 = vshrl.u32 %v1842, 7
        %v1844 = vsub.s32 0, %v1843
        %v1845 = vrot.slane %v1841, %v1844
        %1847 = vrot.lane.b32.xlu0 %v1845, 15
        %v1848 = vpop.permute.xlu0 %1847
        %v1850 = vmul.f32 %v1553, %v1848
        %v1851 = vmul.f32 %v1554, %v1848
        %1854 = vrot.lane.b32.xlu0 %v1850, 114
        %v1855 = vpop.permute.xlu0 %1854
        %1856 = vrot.lane.b32.xlu0 %v1851, 114
        %v1857 = vpop.permute.xlu0 %1856
        %v1860 = vadd.f32 %v1839, %v1855
        %v1861 = vadd.f32 %v1840, %v1857
        %v1862 = vld [vmem:[#allocation2 + $0x2] sm:$0xff]
        %v1863 = vld [vmem:[#allocation2 + $0xa] sm:$0xff]
        %v1864 = vld [vmem:[#allocation8 + $0x1e] sm:$0x1]
        %v1865 = vlaneseq
        %v1866 = vshrl.u32 %v1865, 7
        %v1867 = vsub.s32 0, %v1866
        %v1868 = vrot.slane %v1864, %v1867
        %1870 = vrot.lane.b32.xlu0 %v1868, 1
        %v1871 = vpop.permute.xlu0 %1870
        %v1873 = vmul.f32 %v1862, %v1871
        %v1874 = vmul.f32 %v1863, %v1871
        %v1875 = vadd.f32 %v1860, %v1873
        %v1876 = vadd.f32 %v1861, %v1874
        %v1877 = vld [vmem:[#allocation8 + $0x1f] sm:$0x1]
        %v1878 = vlaneseq
        %v1879 = vshrl.u32 %v1878, 7
        %v1880 = vsub.s32 0, %v1879
        %v1881 = vrot.slane %v1877, %v1880
        %1883 = vrot.lane.b32.xlu0 %v1881, 2
        %v1884 = vpop.permute.xlu0 %1883
        %v1886 = vmul.f32 %v1862, %v1884
        %v1887 = vmul.f32 %v1863, %v1884
        %1890 = vrot.lane.b32.xlu0 %v1886, 127
        %v1891 = vpop.permute.xlu0 %1890
        %1892 = vrot.lane.b32.xlu0 %v1887, 127
        %v1893 = vpop.permute.xlu0 %1892
        %v1896 = vadd.f32 %v1875, %v1891
        %v1897 = vadd.f32 %v1876, %v1893
        %v1898 = vld [vmem:[#allocation8 + $0x20] sm:$0x1]
        %v1899 = vlaneseq
        %v1900 = vshrl.u32 %v1899, 7
        %v1901 = vsub.s32 0, %v1900
        %v1902 = vrot.slane %v1898, %v1901
        %1904 = vrot.lane.b32.xlu0 %v1902, 3
        %v1905 = vpop.permute.xlu0 %1904
        %v1907 = vmul.f32 %v1862, %v1905
        %v1908 = vmul.f32 %v1863, %v1905
        %1911 = vrot.lane.b32.xlu0 %v1907, 126
        %v1912 = vpop.permute.xlu0 %1911
        %1913 = vrot.lane.b32.xlu0 %v1908, 126
        %v1914 = vpop.permute.xlu0 %1913
        %v1917 = vadd.f32 %v1896, %v1912
        %v1918 = vadd.f32 %v1897, %v1914
        %v1919 = vld [vmem:[#allocation8 + $0x21] sm:$0x1]
        %v1920 = vlaneseq
        %v1921 = vshrl.u32 %v1920, 7
        %v1922 = vsub.s32 0, %v1921
        %v1923 = vrot.slane %v1919, %v1922
        %1925 = vrot.lane.b32.xlu0 %v1923, 4
        %v1926 = vpop.permute.xlu0 %1925
        %v1928 = vmul.f32 %v1862, %v1926
        %v1929 = vmul.f32 %v1863, %v1926
        %1932 = vrot.lane.b32.xlu0 %v1928, 125
        %v1933 = vpop.permute.xlu0 %1932
        %1934 = vrot.lane.b32.xlu0 %v1929, 125
        %v1935 = vpop.permute.xlu0 %1934
        %v1938 = vadd.f32 %v1917, %v1933
        %v1939 = vadd.f32 %v1918, %v1935
        %v1940 = vld [vmem:[#allocation8 + $0x22] sm:$0x1]
        %v1941 = vlaneseq
        %v1942 = vshrl.u32 %v1941, 7
        %v1943 = vsub.s32 0, %v1942
        %v1944 = vrot.slane %v1940, %v1943
        %1946 = vrot.lane.b32.xlu0 %v1944, 5
        %v1947 = vpop.permute.xlu0 %1946
        %v1949 = vmul.f32 %v1862, %v1947
        %v1950 = vmul.f32 %v1863, %v1947
        %1953 = vrot.lane.b32.xlu0 %v1949, 124
        %v1954 = vpop.permute.xlu0 %1953
        %1955 = vrot.lane.b32.xlu0 %v1950, 124
        %v1956 = vpop.permute.xlu0 %1955
        %v1959 = vadd.f32 %v1938, %v1954
        %v1960 = vadd.f32 %v1939, %v1956
        %v1961 = vld [vmem:[#allocation8 + $0x23] sm:$0x1]
        %v1962 = vlaneseq
        %v1963 = vshrl.u32 %v1962, 7
        %v1964 = vsub.s32 0, %v1963
        %v1965 = vrot.slane %v1961, %v1964
        %1967 = vrot.lane.b32.xlu0 %v1965, 6
        %v1968 = vpop.permute.xlu0 %1967
        %v1970 = vmul.f32 %v1862, %v1968
        %v1971 = vmul.f32 %v1863, %v1968
        %1974 = vrot.lane.b32.xlu0 %v1970, 123
        %v1975 = vpop.permute.xlu0 %1974
        %1976 = vrot.lane.b32.xlu0 %v1971, 123
        %v1977 = vpop.permute.xlu0 %1976
        %v1980 = vadd.f32 %v1959, %v1975
        %v1981 = vadd.f32 %v1960, %v1977
        %v1982 = vld [vmem:[#allocation8 + $0x24] sm:$0x1]
        %v1983 = vlaneseq
        %v1984 = vshrl.u32 %v1983, 7
        %v1985 = vsub.s32 0, %v1984
        %v1986 = vrot.slane %v1982, %v1985
        %1988 = vrot.lane.b32.xlu0 %v1986, 7
        %v1989 = vpop.permute.xlu0 %1988
        %v1991 = vmul.f32 %v1862, %v1989
        %v1992 = vmul.f32 %v1863, %v1989
        %1995 = vrot.lane.b32.xlu0 %v1991, 122
        %v1996 = vpop.permute.xlu0 %1995
        %1997 = vrot.lane.b32.xlu0 %v1992, 122
        %v1998 = vpop.permute.xlu0 %1997
        %v2001 = vadd.f32 %v1980, %v1996
        %v2002 = vadd.f32 %v1981, %v1998
        %v2003 = vld [vmem:[#allocation8 + $0x25] sm:$0x1]
        %v2004 = vlaneseq
        %v2005 = vshrl.u32 %v2004, 7
        %v2006 = vsub.s32 0, %v2005
        %v2007 = vrot.slane %v2003, %v2006
        %2009 = vrot.lane.b32.xlu0 %v2007, 8
        %v2010 = vpop.permute.xlu0 %2009
        %v2012 = vmul.f32 %v1862, %v2010
        %v2013 = vmul.f32 %v1863, %v2010
        %2016 = vrot.lane.b32.xlu0 %v2012, 121
        %v2017 = vpop.permute.xlu0 %2016
        %2018 = vrot.lane.b32.xlu0 %v2013, 121
        %v2019 = vpop.permute.xlu0 %2018
        %v2022 = vadd.f32 %v2001, %v2017
        %v2023 = vadd.f32 %v2002, %v2019
        %v2024 = vld [vmem:[#allocation8 + $0x26] sm:$0x1]
        %v2025 = vlaneseq
        %v2026 = vshrl.u32 %v2025, 7
        %v2027 = vsub.s32 0, %v2026
        %v2028 = vrot.slane %v2024, %v2027
        %2030 = vrot.lane.b32.xlu0 %v2028, 9
        %v2031 = vpop.permute.xlu0 %2030
        %v2033 = vmul.f32 %v1862, %v2031
        %v2034 = vmul.f32 %v1863, %v2031
        %2037 = vrot.lane.b32.xlu0 %v2033, 120
        %v2038 = vpop.permute.xlu0 %2037
        %2039 = vrot.lane.b32.xlu0 %v2034, 120
        %v2040 = vpop.permute.xlu0 %2039
        %v2043 = vadd.f32 %v2022, %v2038
        %v2044 = vadd.f32 %v2023, %v2040
        %v2045 = vld [vmem:[#allocation8 + $0x27] sm:$0x1]
        %v2046 = vlaneseq
        %v2047 = vshrl.u32 %v2046, 7
        %v2048 = vsub.s32 0, %v2047
        %v2049 = vrot.slane %v2045, %v2048
        %2051 = vrot.lane.b32.xlu0 %v2049, 10
        %v2052 = vpop.permute.xlu0 %2051
        %v2054 = vmul.f32 %v1862, %v2052
        %v2055 = vmul.f32 %v1863, %v2052
        %2058 = vrot.lane.b32.xlu0 %v2054, 119
        %v2059 = vpop.permute.xlu0 %2058
        %2060 = vrot.lane.b32.xlu0 %v2055, 119
        %v2061 = vpop.permute.xlu0 %2060
        %v2064 = vadd.f32 %v2043, %v2059
        %v2065 = vadd.f32 %v2044, %v2061
        %v2066 = vld [vmem:[#allocation8 + $0x28] sm:$0x1]
        %v2067 = vlaneseq
        %v2068 = vshrl.u32 %v2067, 7
        %v2069 = vsub.s32 0, %v2068
        %v2070 = vrot.slane %v2066, %v2069
        %2072 = vrot.lane.b32.xlu0 %v2070, 11
        %v2073 = vpop.permute.xlu0 %2072
        %v2075 = vmul.f32 %v1862, %v2073
        %v2076 = vmul.f32 %v1863, %v2073
        %2079 = vrot.lane.b32.xlu0 %v2075, 118
        %v2080 = vpop.permute.xlu0 %2079
        %2081 = vrot.lane.b32.xlu0 %v2076, 118
        %v2082 = vpop.permute.xlu0 %2081
        %v2085 = vadd.f32 %v2064, %v2080
        %v2086 = vadd.f32 %v2065, %v2082
        %v2087 = vld [vmem:[#allocation8 + $0x29] sm:$0x1]
        %v2088 = vlaneseq
        %v2089 = vshrl.u32 %v2088, 7
        %v2090 = vsub.s32 0, %v2089
        %v2091 = vrot.slane %v2087, %v2090
        %2093 = vrot.lane.b32.xlu0 %v2091, 12
        %v2094 = vpop.permute.xlu0 %2093
        %v2096 = vmul.f32 %v1862, %v2094
        %v2097 = vmul.f32 %v1863, %v2094
        %2100 = vrot.lane.b32.xlu0 %v2096, 117
        %v2101 = vpop.permute.xlu0 %2100
        %2102 = vrot.lane.b32.xlu0 %v2097, 117
        %v2103 = vpop.permute.xlu0 %2102
        %v2106 = vadd.f32 %v2085, %v2101
        %v2107 = vadd.f32 %v2086, %v2103
        %v2108 = vld [vmem:[#allocation8 + $0x2a] sm:$0x1]
        %v2109 = vlaneseq
        %v2110 = vshrl.u32 %v2109, 7
        %v2111 = vsub.s32 0, %v2110
        %v2112 = vrot.slane %v2108, %v2111
        %2114 = vrot.lane.b32.xlu0 %v2112, 13
        %v2115 = vpop.permute.xlu0 %2114
        %v2117 = vmul.f32 %v1862, %v2115
        %v2118 = vmul.f32 %v1863, %v2115
        %2121 = vrot.lane.b32.xlu0 %v2117, 116
        %v2122 = vpop.permute.xlu0 %2121
        %2123 = vrot.lane.b32.xlu0 %v2118, 116
        %v2124 = vpop.permute.xlu0 %2123
        %v2127 = vadd.f32 %v2106, %v2122
        %v2128 = vadd.f32 %v2107, %v2124
        %v2129 = vld [vmem:[#allocation8 + $0x2b] sm:$0x1]
        %v2130 = vlaneseq
        %v2131 = vshrl.u32 %v2130, 7
        %v2132 = vsub.s32 0, %v2131
        %v2133 = vrot.slane %v2129, %v2132
        %2135 = vrot.lane.b32.xlu0 %v2133, 14
        %v2136 = vpop.permute.xlu0 %2135
        %v2138 = vmul.f32 %v1862, %v2136
        %v2139 = vmul.f32 %v1863, %v2136
        %2142 = vrot.lane.b32.xlu0 %v2138, 115
        %v2143 = vpop.permute.xlu0 %2142
        %2144 = vrot.lane.b32.xlu0 %v2139, 115
        %v2145 = vpop.permute.xlu0 %2144
        %v2148 = vadd.f32 %v2127, %v2143
        %v2149 = vadd.f32 %v2128, %v2145
        %v2150 = vld [vmem:[#allocation8 + $0x2c] sm:$0x1]
        %v2151 = vlaneseq
        %v2152 = vshrl.u32 %v2151, 7
        %v2153 = vsub.s32 0, %v2152
        %v2154 = vrot.slane %v2150, %v2153
        %2156 = vrot.lane.b32.xlu0 %v2154, 15
        %v2157 = vpop.permute.xlu0 %2156
        %v2159 = vmul.f32 %v1862, %v2157
        %v2160 = vmul.f32 %v1863, %v2157
        %2163 = vrot.lane.b32.xlu0 %v2159, 114
        %v2164 = vpop.permute.xlu0 %2163
        %2165 = vrot.lane.b32.xlu0 %v2160, 114
        %v2166 = vpop.permute.xlu0 %2165
        %v2169 = vadd.f32 %v2148, %v2164
        %v2170 = vadd.f32 %v2149, %v2166
        %v2171 = vld [vmem:[%s4] sm:$0x1]
        %v2173 = vlaneseq
        %v2174 = vshrl.u32 %v2173, 7
        %v2175 = vsub.s32 0, %v2174
        %v2176 = vrot.slane %v2171, %v2175
        %2177 = vrot.lane.b32.xlu0 %v2176, 1
        %v2178 = vpop.permute.xlu0 %2177
        %v2180 = vadd.f32 %v2169, %v2178
        %v2181 = vadd.f32 %v2170, %v2178
        %v2182 = vld [vmem:[%s237] sm:$0xff]
        %v2183 = vld [vmem:[%s237 + $0x8] sm:$0xff]
        %2186 = vrot.lane.b32.xlu0 %v2182, 1
        %v2187 = vpop.permute.xlu0 %2186
        %2188 = vrot.lane.b32.xlu0 %v2183, 1
        %v2189 = vpop.permute.xlu0 %2188
        %v2192 = vadd.f32 %v2180, %v2187
        %v2193 = vadd.f32 %v2181, %v2189
        %2196 = vrot.lane.b32.xlu0 %v2192, 127
        %v2197 = vpop.permute.xlu0 %2196
        %2198 = vrot.lane.b32.xlu0 %v2193, 127
        %v2199 = vpop.permute.xlu0 %2198
        %vm2202 = vcmask 523264
        %2203 = vst.msk [vmem:[%s271] sm:$0xff] %vm2202, %v2197
        %2204 = vst.msk [vmem:[%s271 + $0x8] sm:$0xff] %vm2202, %v2199
        %s2205 = sand.u32 %s141, 1
        %s2206 = scalar_lea.sflag [#allocation5], %s2205
        %s2207 = sand.u32 %s141, 1
        %s2208 = smul.addr %s2207, 16
        %s2209 = scalar_lea.vmem [#allocation9], %s2208
        // Predicated region
        $region53: #{tpu_custom_call.1} parent=39 // pred_check
          %p2210 = pneg %p151
        $region54: #{tpu_custom_call.1} parent=39 // pred_check_branch
          %2212 = sbr.rel (%p2210) target = $region56
        $region55: #{tpu_custom_call.1} parent=39 // pred_region
          %s2214 = ssub.s32 256, 256
          %2215 = vsyncadd %s2206, %s2214
          %s2216 = smul.addr %s23, 2
          %s2217 = smul.addr %s2216, 128
          %s2218 = scalar_lea.hbm %s5, %s2217
          %s2219 = sshll.u32 %s2209, 4
          %s2220 = int_to_ptr.vmem [resolvable:$true] %s2219
          %2225 = dma.vmem_to_hbm [thread:$0]  %s2220, 256, %s2218, %s2206, 128, 128, 8
        $region56: #{tpu_custom_call.1} parent=39 // pred_fallthru
          _
      $region40: #{tpu_custom_call.1} parent=5 // pred_fallthru
        _
      %p2226 = scmp.le.s32.totalorder 2, %s18
      // Predicated region
      $region57: #{tpu_custom_call.1} parent=5 // pred_check
        %p2227 = pneg %p2226
      $region58: #{tpu_custom_call.1} parent=5 // pred_check_branch
        %2229 = sbr.rel (%p2227) target = $region60
      $region59: #{tpu_custom_call.1} parent=5 // pred_region
        %s2230 = ssub.s32 %s18, 2
        // Predicated region
        $region61: #{tpu_custom_call.1} parent=59 // pred_check
          %p2231 = pneg %p157
        $region62: #{tpu_custom_call.1} parent=59 // pred_check_branch
          %2233 = sbr.rel (%p2231) target = $region64
        $region63: #{tpu_custom_call.1} parent=59 // pred_region
          %s2234 = sand.u32 %s142, 1
          %s2235 = scalar_lea.sflag [#allocation5], %s2234
          %s2236 = sand.u32 %s142, 1
          %s2237 = smul.addr %s2236, 16
          %s2238 = scalar_lea.vmem [#allocation9], %s2237
          %2239 = dma.done %s2235, 256
        $region64: #{tpu_custom_call.1} parent=59 // pred_fallthru
          _
      $region60: #{tpu_custom_call.1} parent=5 // pred_fallthru
        _
    $region6: #{tpu_custom_call.1} parent=1 // loop_footer
      %s22 = sadd.s32 1, %s18
    $region7: #{tpu_custom_call.1} parent=1 // loop_footer_branch
      %17 = sbr.rel target = $region3
    $region8: #{tpu_custom_call.1} parent=1 // loop_exit
      _
    %2240 = vsyncpa [#allocation4], 1
    %s2241 = scalar_lea.sflag [#allocation4], 1
    %2242 = vsyncpa %s2241, 1
    %2243 = vsyncpa [#allocation7], 1
    %2244 = vsyncpa [#allocation5], 1
    %s2245 = scalar_lea.sflag [#allocation5], 1
    %2246 = vsyncpa %s2245, 1

</llo_original>
